<compile_context>
chip_gen: v7x
topology: tpu7x:2x2x1
jax: 0.10.0
libtpu: 0.0.40
codegen_flags: <defaults>
</compile_context>

<pallas_src>
import functools

import numpy as np
import jax
import jax.numpy as jnp
from jax.experimental import pallas as pl
from jax.experimental.pallas import tpu as pltpu

NUM_JOINTS = 24
DIM_PER_JOINT = 6
DIM_FEAT = 13 + DIM_PER_JOINT            # 19
ROT_DIM = 9 * NUM_JOINTS                 # 216
JTR_DIM = 3 * NUM_JOINTS                 # 72
OUT_DIM = NUM_JOINTS * DIM_PER_JOINT     # 144
H_DIM = NUM_JOINTS * DIM_FEAT            # 456
CHAIN_W = 128                            # padded width of per-level chain mats

KTREE_PARENTS = np.array(
    [-1, 0, 0, 0, 1, 2, 3, 4, 5, 6, 7, 8, 9, 9, 9, 12, 13, 14, 16, 17, 18, 19,
     20, 21], dtype=np.int32)


def _compute_levels():
    """Contiguous (start, end) joint ranges per kinematic-tree depth level."""
    depth = np.zeros(NUM_JOINTS, np.int64)
    for j in range(NUM_JOINTS):
        p = int(KTREE_PARENTS[j])
        depth[j] = 0 if p < 0 else depth[p] + 1
    levels = []
    for d in range(int(depth.max()) + 1):
        idx = np.nonzero(depth == d)[0]
        assert idx.size > 0 and np.all(np.diff(idx) == 1), \
            "kinematic tree is not level-contiguous"
        levels.append((int(idx[0]), int(idx[-1]) + 1))
    return levels


LEVELS = _compute_levels()               # 9 levels for the SMPL tree
NUM_LEVELS = len(LEVELS)
assert max(DIM_FEAT * (e - s) for s, e in LEVELS) <= CHAIN_W


# --------------------------------------------------------------------------
# Kernel
# --------------------------------------------------------------------------
def pose_encoder_kernel(rot_ref, jtr_ref, wcr_ref, wcj_ref, wdiff_ref,
                        ssum_ref, wbone_ref, b1_ref, c_ref, w2_ref, b2_ref,
                        out_ref, h_ref):
    rot = rot_ref[...]                                          # (bm, 216) bf16
    jtr = jtr_ref[...]                                          # (bm, 72)  bf16

    # (1) Bone lengths: child-parent difference operator + per-joint
    #     squared-norm sum, both tiny bf16 MXU dots.
    bone = jnp.dot(jtr, wdiff_ref[...],
                   preferred_element_type=jnp.float32)          # (bm, 72)
    bone_sq = (bone * bone).astype(jnp.bfloat16)
    bone_l = jnp.sqrt(jnp.dot(bone_sq, ssum_ref[...],
                              preferred_element_type=jnp.float32))  # (bm, 24)

    # (2) Full Linear-1 pre-activation (everything except the parent-feature
    #     term), staged in VMEM scratch.  The root joint's global-feature term
    #     (layer_0 composed with w1p_root) and all parent output biases are
    #     pre-folded into wcr/wcj/b1 host-side.
    h_ref[...] = (
        jnp.dot(rot, wcr_ref[...], preferred_element_type=jnp.float32)
        + jnp.dot(jtr, wcj_ref[...], preferred_element_type=jnp.float32)
        + jnp.dot(bone_l.astype(jnp.bfloat16), wbone_ref[...],
                  preferred_element_type=jnp.float32)
        + b1_ref[...])                                          # (bm, 456)

    # (3) Kinematic chain, batched per depth level: root is a pure ReLU, each
    #     deeper level is ONE dot against the composed C_d = W2_par @ W1p_child
    #     (8 serial (bm,128)@(128,128) bf16 dots total).
    h_prev = None
    for d, (s, e) in enumerate(LEVELS):
        cs, nw = DIM_FEAT * s, DIM_FEAT * (e - s)
        pre = h_ref[:, cs:cs + nw]
        if d > 0:
            contrib = jnp.dot(h_prev, c_ref[d - 1],
                              preferred_element_type=jnp.float32)   # (bm, 128)
            pre = pre + contrib[:, :nw]                         # slice result
        h = jnp.maximum(pre, 0.0)                               # ReLU
        h_ref[:, cs:cs + nw] = h
        if d + 1 < NUM_LEVELS:
            pad = jnp.zeros((h.shape[0], CHAIN_W - nw), jnp.bfloat16)
            h_prev = jnp.concatenate([h.astype(jnp.bfloat16), pad], axis=-1)

    # (4) All 24 joint outputs with one fused block-diagonal W2 matmul and a
    #     single lane-dense (bm, 144) writeback.
    out_ref[...] = (jnp.dot(h_ref[...].astype(jnp.bfloat16), w2_ref[...],
                            preferred_element_type=jnp.float32)
                    + b2_ref[...])


# --------------------------------------------------------------------------
# Parameter packing (pure host-side preprocessing of the module weights)
# --------------------------------------------------------------------------
def pack_params(params):
    """Fold the per-joint LEAP parameters into kernel-friendly block matrices."""
    p = {k: np.asarray(v, np.float32) for k, v in params.items()}
    w0r, w0j, b0 = p['w0r'], p['w0j'], p['b0']
    w1r, w1j, w1b, w1p = p['w1r'], p['w1j'], p['w1b'], p['w1p']
    b1, w2, b2 = p['b1'], p['w2'], p['b2']

    wcr = np.zeros((ROT_DIM, H_DIM), np.float32)
    wcj = np.zeros((JTR_DIM, H_DIM), np.float32)
    wbone = np.zeros((NUM_JOINTS, H_DIM), np.float32)
    b1_flat = np.zeros((1, H_DIM), np.float32)
    b2_flat = np.zeros((1, OUT_DIM), np.float32)
    w2blk = np.zeros((H_DIM, OUT_DIM), np.float32)

    for j in range(NUM_JOINTS):
        cs = DIM_FEAT * j
        wcr[9 * j:9 * j + 9, cs:cs + DIM_FEAT] = w1r[j]
        wcj[3 * j:3 * j + 3, cs:cs + DIM_FEAT] = w1j[j]
        wbone[j, cs:cs + DIM_FEAT] = w1b[j, 0]
        b1_flat[0, cs:cs + DIM_FEAT] = b1[j, 0]
        b2_flat[0, DIM_PER_JOINT * j:DIM_PER_JOINT * (j + 1)] = b2[j, 0]
        w2blk[cs:cs + DIM_FEAT,
              DIM_PER_JOINT * j:DIM_PER_JOINT * (j + 1)] = w2[j]
        par = int(KTREE_PARENTS[j])
        if par < 0:
            # Compose layer_0 (global feature) with the root's parent weight.
            wcr[:, cs:cs + DIM_FEAT] += w0r @ w1p[0]
            wcj[:, cs:cs + DIM_FEAT] += w0j @ w1p[0]
            b1_flat[0, cs:cs + DIM_FEAT] += b0[0] @ w1p[0]
        else:
            # Fold the parent's output bias (b2_par @ w1p_j) into this joint.
            b1_flat[0, cs:cs + DIM_FEAT] += b2[par, 0] @ w1p[j]

    # Bone-vector difference operator (root keeps its own Jtr).
    wdiff = np.zeros((JTR_DIM, JTR_DIM), np.float32)
    for j in range(NUM_JOINTS):
        par = int(KTREE_PARENTS[j])
        for k in range(3):
            wdiff[3 * j + k, 3 * j + k] += 1.0
            if par >= 0:
                wdiff[3 * par + k, 3 * j + k] -= 1.0

    # Per-joint squared-norm summation matrix (72, 24).
    ssum = np.zeros((JTR_DIM, NUM_JOINTS), np.float32)
    for j in range(NUM_JOINTS):
        ssum[3 * j:3 * j + 3, j] = 1.0

    # Composed per-level chain matrices C_d = W2_parent @ W1p_child, padded to
    # lane/sublane-aligned (128,128) blocks.
    c_stack = np.zeros((NUM_LEVELS - 1, CHAIN_W, CHAIN_W), np.float32)
    for d in range(1, NUM_LEVELS):
        s, e = LEVELS[d]
        ps, _ = LEVELS[d - 1]
        for ci, j in enumerate(range(s, e)):
            par = int(KTREE_PARENTS[j])
            pi = par - ps
            c_stack[d - 1,
                    DIM_FEAT * pi:DIM_FEAT * (pi + 1),
                    DIM_FEAT * ci:DIM_FEAT * (ci + 1)] = w2[par] @ w1p[j]

    bf = jnp.bfloat16
    return dict(
        wcr=jnp.asarray(wcr, bf), wcj=jnp.asarray(wcj, bf),
        wdiff=jnp.asarray(wdiff, bf), ssum=jnp.asarray(ssum, bf),
        wbone=jnp.asarray(wbone, bf), b1_flat=jnp.asarray(b1_flat),
        c_stack=jnp.asarray(c_stack, bf), w2blk=jnp.asarray(w2blk, bf),
        b2_flat=jnp.asarray(b2_flat))


# --------------------------------------------------------------------------
# Wrapper
# --------------------------------------------------------------------------
def _round_up(x, m):
    return (x + m - 1) // m * m


def _choose_bm(batch, block_rows):
    """Batch tile: >=2 grid steps once the batch allows it (v7x has 2 TCs),
    and tile-count-aware sizing to minimize padded rows in the last tile."""
    if batch <= 8:
        return 8
    n_tiles = max(2, -(-batch // block_rows))
    return _round_up(-(-batch // n_tiles), 8)


def _resident_spec(arr):
    nd = arr.ndim
    return pl.BlockSpec(arr.shape, lambda i, _nd=nd: (0,) * _nd)


@functools.partial(jax.jit, static_argnames=("block_rows",))
def hierarchical_pose_encoder(rots, jtrs, packed, block_rows=512):
    """rots: (B, 24, 9), jtrs: (B, 24, 3)  ->  (B, 144) float32."""
    B = rots.shape[0]
    # bf16 inputs: half the HBM traffic and native MXU dtype; f32 accumulation.
    rots_flat = rots.reshape(B, ROT_DIM).astype(jnp.bfloat16)
    jtrs_flat = jtrs.reshape(B, JTR_DIM).astype(jnp.bfloat16)

    bm = _choose_bm(B, block_rows)
    b_pad = _round_up(B, bm)
    if b_pad != B:
        rots_flat = jnp.pad(rots_flat, ((0, b_pad - B), (0, 0)))
        jtrs_flat = jnp.pad(jtrs_flat, ((0, b_pad - B), (0, 0)))
    grid = (b_pad // bm,)

    weights = [packed['wcr'], packed['wcj'], packed['wdiff'], packed['ssum'],
               packed['wbone'], packed['b1_flat'], packed['c_stack'],
               packed['w2blk'], packed['b2_flat']]

    in_specs = [pl.BlockSpec((bm, ROT_DIM), lambda i: (i, 0)),
                pl.BlockSpec((bm, JTR_DIM), lambda i: (i, 0))]
    in_specs += [_resident_spec(w) for w in weights]

    # Advisory cost estimate for the XLA scheduler.
    chain_flops = sum(
        2 * (DIM_FEAT * (LEVELS[d - 1][1] - LEVELS[d - 1][0]))
          * (DIM_FEAT * (LEVELS[d][1] - LEVELS[d][0]))
        for d in range(1, NUM_LEVELS))
    flops_per_row = (2 * (ROT_DIM + JTR_DIM) * H_DIM       # combined Linear-1
                     + 2 * JTR_DIM * JTR_DIM               # bone difference
                     + 2 * JTR_DIM * NUM_JOINTS            # squared-norm sum
                     + 2 * NUM_JOINTS * H_DIM              # bone_l -> hidden
                     + chain_flops                         # level chain
                     + 2 * H_DIM * OUT_DIM)                # fused W2
    weight_bytes = sum(int(w.size) * w.dtype.itemsize for w in weights)
    cost = pl.CostEstimate(
        flops=b_pad * flops_per_row,
        transcendentals=b_pad * NUM_JOINTS,
        bytes_accessed=b_pad * (2 * (ROT_DIM + JTR_DIM) + 4 * OUT_DIM)
        + weight_bytes)

    out = pl.pallas_call(
        pose_encoder_kernel,
        out_shape=jax.ShapeDtypeStruct((b_pad, OUT_DIM), jnp.float32),
        grid=grid,
        in_specs=in_specs,
        out_specs=pl.BlockSpec((bm, OUT_DIM), lambda i: (i, 0)),
        scratch_shapes=[pltpu.VMEM((bm, H_DIM), jnp.float32)],
        compiler_params=pltpu.CompilerParams(
            dimension_semantics=("parallel",),
            vmem_limit_bytes=32 * 1024 * 1024),
        cost_estimate=cost,
    )(rots_flat, jtrs_flat, *weights)
    return out[:B]


# --------------------------------------------------------------------------
# Reference (pure JAX, mirrors the PyTorch forward) and synthetic params
# --------------------------------------------------------------------------
def init_params(key):
    """Deterministic synthetic params matching nn.Linear default-init shapes."""
    ks = jax.random.split(key, 6)

    def unif(k, shape, fan_in):
        bound = 1.0 / np.sqrt(fan_in)
        return jax.random.uniform(k, shape, jnp.float32, -bound, bound)

    in0 = ROT_DIM + JTR_DIM                              # 288
    w0 = unif(ks[0], (in0, DIM_PER_JOINT), in0)          # stored as W^T (in,out)
    b0 = unif(ks[1], (1, DIM_PER_JOINT), in0)
    w1 = unif(ks[2], (NUM_JOINTS, DIM_FEAT, DIM_FEAT), DIM_FEAT)
    b1 = unif(ks[3], (NUM_JOINTS, 1, DIM_FEAT), DIM_FEAT)
    w2 = unif(ks[4], (NUM_JOINTS, DIM_FEAT, DIM_PER_JOINT), DIM_FEAT)
    b2 = unif(ks[5], (NUM_JOINTS, 1, DIM_PER_JOINT), DIM_FEAT)

    return dict(
        w0r=w0[:ROT_DIM], w0j=w0[ROT_DIM:], b0=b0,
        # W1 split to mirror torch.cat([rot(9), Jtr(3), bone_l(1), feat(6)])
        w1r=w1[:, 0:9], w1j=w1[:, 9:12], w1b=w1[:, 12:13], w1p=w1[:, 13:19],
        b1=b1, w2=w2, b2=b2)


def reference(rots, jtrs, params):
    """Pure-JAX reproduction of the PyTorch forward (rel_joints=False)."""
    B = rots.shape[0]
    rots_f = rots.reshape(B, -1)
    jtrs_f = jtrs.reshape(B, -1)
    gf = rots_f @ params['w0r'] + jtrs_f @ params['w0j'] + params['b0'][0]
    outs = [None] * NUM_JOINTS
    for j in range(NUM_JOINTS):
        rot = rots[:, j]
        jtr = jtrs[:, j]
        p = int(KTREE_PARENTS[j])
        if p == -1:
            pf, bone = gf, jtr
        else:
            pf, bone = outs[p], jtr - jtrs[:, p]
        bone_l = jnp.linalg.norm(bone, axis=-1, keepdims=True)
        in_feat = jnp.concatenate([rot, jtr, bone_l, pf], axis=-1)
        w1 = jnp.concatenate([params['w1r'][j], params['w1j'][j],
                              params['w1b'][j], params['w1p'][j]], axis=0)
        h = jnp.maximum(in_feat @ w1 + params['b1'][j, 0], 0.0)
        outs[j] = h @ params['w2'][j] + params['b2'][j, 0]
    return jnp.concatenate(outs, axis=-1)


if __name__ == "__main__":
    key = jax.random.PRNGKey(0)
    kp, kr, kj = jax.random.split(key, 3)
    params = init_params(kp)
    packed = pack_params(params)

    B = 8
    rots = jax.random.normal(kr, (B, NUM_JOINTS, 9), jnp.float32)
    jtrs = jax.random.normal(kj, (B, NUM_JOINTS, 3), jnp.float32)

    out = hierarchical_pose_encoder(rots, jtrs, packed)
    out = jax.block_until_ready(out)
    assert out.shape == (B, NUM_JOINTS * DIM_PER_JOINT)

    ref = reference(rots, jtrs, params)
    # Tolerance covers bf16 quantization of inputs / composed weights along the
    # 9-level chain (everything accumulates in f32; measured error ~few 1e-3).
    np.testing.assert_allclose(np.asarray(out), np.asarray(ref),
                               rtol=2e-2, atol=2e-2)
    print("KERNEL_OK")
</pallas_src>

<mosaic_0001>
module attributes {stable_mosaic.version = 11 : i64} {
  func.func @pose_encoder_kernel(%arg0: i32, %arg1: memref<8x216xbf16, #tpu.memory_space<vmem>>, %arg2: memref<8x72xbf16, #tpu.memory_space<vmem>>, %arg3: memref<216x456xbf16, #tpu.memory_space<vmem>>, %arg4: memref<72x456xbf16, #tpu.memory_space<vmem>>, %arg5: memref<72x72xbf16, #tpu.memory_space<vmem>>, %arg6: memref<72x24xbf16, #tpu.memory_space<vmem>>, %arg7: memref<24x456xbf16, #tpu.memory_space<vmem>>, %arg8: memref<1x456xf32, #tpu.memory_space<vmem>>, %arg9: memref<8x128x128xbf16, #tpu.memory_space<vmem>>, %arg10: memref<456x144xbf16, #tpu.memory_space<vmem>>, %arg11: memref<1x144xf32, #tpu.memory_space<vmem>>, %arg12: memref<8x144xf32, #tpu.memory_space<vmem>>, %arg13: memref<8x456xf32, #tpu.memory_space<vmem>>) attributes {dimension_semantics = [#tpu.dimension_semantics<parallel>], iteration_bounds = array<i64: 1>, scalar_prefetch = 0 : i64, scratch_operands = 1 : i64, tpu.core_type = #tpu.core_type<tc>, window_params = [{transform_indices = @transform_0, window_bounds = array<i64: 8, 216>}, {transform_indices = @transform_1, window_bounds = array<i64: 8, 72>}, {pipeline_mode = #tpu.pipeline_mode<synchronous>, transform_indices = @transform_2, window_bounds = array<i64: 216, 456>}, {pipeline_mode = #tpu.pipeline_mode<synchronous>, transform_indices = @transform_3, window_bounds = array<i64: 72, 456>}, {pipeline_mode = #tpu.pipeline_mode<synchronous>, transform_indices = @transform_4, window_bounds = array<i64: 72, 72>}, {pipeline_mode = #tpu.pipeline_mode<synchronous>, transform_indices = @transform_5, window_bounds = array<i64: 72, 24>}, {pipeline_mode = #tpu.pipeline_mode<synchronous>, transform_indices = @transform_6, window_bounds = array<i64: 24, 456>}, {pipeline_mode = #tpu.pipeline_mode<synchronous>, transform_indices = @transform_7, window_bounds = array<i64: 1, 456>}, {pipeline_mode = #tpu.pipeline_mode<synchronous>, transform_indices = @transform_8, window_bounds = array<i64: 8, 128, 128>}, {pipeline_mode = #tpu.pipeline_mode<synchronous>, transform_indices = @transform_9, window_bounds = array<i64: 456, 144>}, {pipeline_mode = #tpu.pipeline_mode<synchronous>, transform_indices = @transform_10, window_bounds = array<i64: 1, 144>}, {transform_indices = @transform_11, window_bounds = array<i64: 8, 144>}]} {
    %c0 = arith.constant 0 : index
    %c0_0 = arith.constant 0 : index
    %0 = vector.load %arg1[%c0, %c0_0] : memref<8x216xbf16, #tpu.memory_space<vmem>>, vector<8x216xbf16>
    %c0_1 = arith.constant 0 : index
    %c0_2 = arith.constant 0 : index
    %1 = vector.load %arg2[%c0_1, %c0_2] : memref<8x72xbf16, #tpu.memory_space<vmem>>, vector<8x72xbf16>
    %c0_3 = arith.constant 0 : index
    %c0_4 = arith.constant 0 : index
    %2 = vector.load %arg5[%c0_3, %c0_4] : memref<72x72xbf16, #tpu.memory_space<vmem>>, vector<72x72xbf16>
    %cst = arith.constant dense<0.000000e+00> : vector<8x72xf32>
    %3 = tpu.matmul %1, %2, %cst {dimension_numbers = #tpu.dot_dimension_numbers<[1], [0], [0], [1], [0, 0, 1, 1], [], []>} : vector<8x72xbf16>, vector<72x72xbf16>, vector<8x72xf32> -> vector<8x72xf32>
    %4 = arith.mulf %3, %3 : vector<8x72xf32>
    %5 = arith.truncf %4 : vector<8x72xf32> to vector<8x72xbf16>
    %c0_5 = arith.constant 0 : index
    %c0_6 = arith.constant 0 : index
    %6 = vector.load %arg6[%c0_5, %c0_6] : memref<72x24xbf16, #tpu.memory_space<vmem>>, vector<72x24xbf16>
    %cst_7 = arith.constant dense<0.000000e+00> : vector<8x24xf32>
    %7 = tpu.matmul %5, %6, %cst_7 {dimension_numbers = #tpu.dot_dimension_numbers<[1], [0], [0], [1], [0, 0, 1, 1], [], []>} : vector<8x72xbf16>, vector<72x24xbf16>, vector<8x24xf32> -> vector<8x24xf32>
    %8 = math.sqrt %7 : vector<8x24xf32>
    %c0_8 = arith.constant 0 : index
    %c0_9 = arith.constant 0 : index
    %9 = vector.load %arg3[%c0_8, %c0_9] : memref<216x456xbf16, #tpu.memory_space<vmem>>, vector<216x456xbf16>
    %cst_10 = arith.constant dense<0.000000e+00> : vector<8x456xf32>
    %10 = tpu.matmul %0, %9, %cst_10 {dimension_numbers = #tpu.dot_dimension_numbers<[1], [0], [0], [1], [0, 0, 1, 1], [], []>} : vector<8x216xbf16>, vector<216x456xbf16>, vector<8x456xf32> -> vector<8x456xf32>
    %c0_11 = arith.constant 0 : index
    %c0_12 = arith.constant 0 : index
    %11 = vector.load %arg4[%c0_11, %c0_12] : memref<72x456xbf16, #tpu.memory_space<vmem>>, vector<72x456xbf16>
    %cst_13 = arith.constant dense<0.000000e+00> : vector<8x456xf32>
    %12 = tpu.matmul %1, %11, %cst_13 {dimension_numbers = #tpu.dot_dimension_numbers<[1], [0], [0], [1], [0, 0, 1, 1], [], []>} : vector<8x72xbf16>, vector<72x456xbf16>, vector<8x456xf32> -> vector<8x456xf32>
    %13 = arith.addf %10, %12 : vector<8x456xf32>
    %14 = arith.truncf %8 : vector<8x24xf32> to vector<8x24xbf16>
    %c0_14 = arith.constant 0 : index
    %c0_15 = arith.constant 0 : index
    %15 = vector.load %arg7[%c0_14, %c0_15] : memref<24x456xbf16, #tpu.memory_space<vmem>>, vector<24x456xbf16>
    %cst_16 = arith.constant dense<0.000000e+00> : vector<8x456xf32>
    %16 = tpu.matmul %14, %15, %cst_16 {dimension_numbers = #tpu.dot_dimension_numbers<[1], [0], [0], [1], [0, 0, 1, 1], [], []>} : vector<8x24xbf16>, vector<24x456xbf16>, vector<8x456xf32> -> vector<8x456xf32>
    %17 = arith.addf %13, %16 : vector<8x456xf32>
    %c0_17 = arith.constant 0 : index
    %c0_18 = arith.constant 0 : index
    %18 = vector.load %arg8[%c0_17, %c0_18] : memref<1x456xf32, #tpu.memory_space<vmem>>, vector<1x456xf32>
    %19 = vector.broadcast %18 : vector<1x456xf32> to vector<8x456xf32>
    %20 = arith.addf %17, %19 : vector<8x456xf32>
    %c0_19 = arith.constant 0 : index
    %c0_20 = arith.constant 0 : index
    %21 = vector.load %arg13[%c0_19, %c0_20] : memref<8x456xf32, #tpu.memory_space<vmem>>, vector<8x456xf32>
    tpu.vector_store %arg13[%c0_19, %c0_20], %20 {strides = array<i32>} : memref<8x456xf32, #tpu.memory_space<vmem>>, vector<8x456xf32>,
    %c0_21 = arith.constant 0 : index
    %c0_22 = arith.constant 0 : index
    %22 = vector.load %arg13[%c0_21, %c0_22] : memref<8x456xf32, #tpu.memory_space<vmem>>, vector<8x19xf32>
    %cst_23 = arith.constant 0.000000e+00 : f32
    %23 = vector.broadcast %cst_23 : f32 to vector<8x19xf32>
    %24 = arith.maximumf %22, %23 : vector<8x19xf32>
    %c0_24 = arith.constant 0 : index
    %c0_25 = arith.constant 0 : index
    %25 = vector.load %arg13[%c0_24, %c0_25] : memref<8x456xf32, #tpu.memory_space<vmem>>, vector<8x19xf32>
    tpu.vector_store %arg13[%c0_24, %c0_25], %24 {strides = array<i32>} : memref<8x456xf32, #tpu.memory_space<vmem>>, vector<8x19xf32>,
    %cst_26 = arith.constant 0.000000e+00 : bf16
    %26 = vector.broadcast %cst_26 : bf16 to vector<8x109xbf16>
    %27 = arith.truncf %24 : vector<8x19xf32> to vector<8x19xbf16>
    %28 = tpu.concatenate %27, %26 in 1 : vector<8x19xbf16>, vector<8x109xbf16> -> vector<8x128xbf16>
    %c0_27 = arith.constant 0 : index
    %c19 = arith.constant 19 : index
    %29 = vector.load %arg13[%c0_27, %c19] : memref<8x456xf32, #tpu.memory_space<vmem>>, vector<8x57xf32>
    %c0_28 = arith.constant 0 : index
    %c0_29 = arith.constant 0 : index
    %c0_30 = arith.constant 0 : index
    %30 = vector.load %arg9[%c0_28, %c0_29, %c0_30] : memref<8x128x128xbf16, #tpu.memory_space<vmem>>, vector<1x128x128xbf16>
    %31 = vector.shape_cast %30 : vector<1x128x128xbf16> to vector<128x128xbf16>
    %cst_31 = arith.constant dense<0.000000e+00> : vector<8x128xf32>
    %32 = tpu.matmul %28, %31, %cst_31 {dimension_numbers = #tpu.dot_dimension_numbers<[1], [0], [0], [1], [0, 0, 1, 1], [], []>} : vector<8x128xbf16>, vector<128x128xbf16>, vector<8x128xf32> -> vector<8x128xf32>
    %33 = vector.extract_strided_slice %32 {offsets = [0, 0], sizes = [8, 57], strides = [1, 1]} : vector<8x128xf32> to vector<8x57xf32>
    %34 = arith.addf %29, %33 : vector<8x57xf32>
    %cst_32 = arith.constant 0.000000e+00 : f32
    %35 = vector.broadcast %cst_32 : f32 to vector<8x57xf32>
    %36 = arith.maximumf %34, %35 : vector<8x57xf32>
    %c0_33 = arith.constant 0 : index
    %c19_34 = arith.constant 19 : index
    %37 = vector.load %arg13[%c0_33, %c19_34] : memref<8x456xf32, #tpu.memory_space<vmem>>, vector<8x57xf32>
    tpu.vector_store %arg13[%c0_33, %c19_34], %36 {strides = array<i32>} : memref<8x456xf32, #tpu.memory_space<vmem>>, vector<8x57xf32>,
    %cst_35 = arith.constant 0.000000e+00 : bf16
    %38 = vector.broadcast %cst_35 : bf16 to vector<8x71xbf16>
    %39 = arith.truncf %36 : vector<8x57xf32> to vector<8x57xbf16>
    %40 = tpu.concatenate %39, %38 in 1 : vector<8x57xbf16>, vector<8x71xbf16> -> vector<8x128xbf16>
    %c0_36 = arith.constant 0 : index
    %c76 = arith.constant 76 : index
    %41 = vector.load %arg13[%c0_36, %c76] : memref<8x456xf32, #tpu.memory_space<vmem>>, vector<8x57xf32>
    %c1 = arith.constant 1 : index
    %c0_37 = arith.constant 0 : index
    %c0_38 = arith.constant 0 : index
    %42 = vector.load %arg9[%c1, %c0_37, %c0_38] : memref<8x128x128xbf16, #tpu.memory_space<vmem>>, vector<1x128x128xbf16>
    %43 = vector.shape_cast %42 : vector<1x128x128xbf16> to vector<128x128xbf16>
    %cst_39 = arith.constant dense<0.000000e+00> : vector<8x128xf32>
    %44 = tpu.matmul %40, %43, %cst_39 {dimension_numbers = #tpu.dot_dimension_numbers<[1], [0], [0], [1], [0, 0, 1, 1], [], []>} : vector<8x128xbf16>, vector<128x128xbf16>, vector<8x128xf32> -> vector<8x128xf32>
    %45 = vector.extract_strided_slice %44 {offsets = [0, 0], sizes = [8, 57], strides = [1, 1]} : vector<8x128xf32> to vector<8x57xf32>
    %46 = arith.addf %41, %45 : vector<8x57xf32>
    %cst_40 = arith.constant 0.000000e+00 : f32
    %47 = vector.broadcast %cst_40 : f32 to vector<8x57xf32>
    %48 = arith.maximumf %46, %47 : vector<8x57xf32>
    %c0_41 = arith.constant 0 : index
    %c76_42 = arith.constant 76 : index
    %49 = vector.load %arg13[%c0_41, %c76_42] : memref<8x456xf32, #tpu.memory_space<vmem>>, vector<8x57xf32>
    tpu.vector_store %arg13[%c0_41, %c76_42], %48 {strides = array<i32>} : memref<8x456xf32, #tpu.memory_space<vmem>>, vector<8x57xf32>,
    %cst_43 = arith.constant 0.000000e+00 : bf16
    %50 = vector.broadcast %cst_43 : bf16 to vector<8x71xbf16>
    %51 = arith.truncf %48 : vector<8x57xf32> to vector<8x57xbf16>
    %52 = tpu.concatenate %51, %50 in 1 : vector<8x57xbf16>, vector<8x71xbf16> -> vector<8x128xbf16>
    %c0_44 = arith.constant 0 : index
    %c133 = arith.constant 133 : index
    %53 = vector.load %arg13[%c0_44, %c133] : memref<8x456xf32, #tpu.memory_space<vmem>>, vector<8x57xf32>
    %c2 = arith.constant 2 : index
    %c0_45 = arith.constant 0 : index
    %c0_46 = arith.constant 0 : index
    %54 = vector.load %arg9[%c2, %c0_45, %c0_46] : memref<8x128x128xbf16, #tpu.memory_space<vmem>>, vector<1x128x128xbf16>
    %55 = vector.shape_cast %54 : vector<1x128x128xbf16> to vector<128x128xbf16>
    %cst_47 = arith.constant dense<0.000000e+00> : vector<8x128xf32>
    %56 = tpu.matmul %52, %55, %cst_47 {dimension_numbers = #tpu.dot_dimension_numbers<[1], [0], [0], [1], [0, 0, 1, 1], [], []>} : vector<8x128xbf16>, vector<128x128xbf16>, vector<8x128xf32> -> vector<8x128xf32>
    %57 = vector.extract_strided_slice %56 {offsets = [0, 0], sizes = [8, 57], strides = [1, 1]} : vector<8x128xf32> to vector<8x57xf32>
    %58 = arith.addf %53, %57 : vector<8x57xf32>
    %cst_48 = arith.constant 0.000000e+00 : f32
    %59 = vector.broadcast %cst_48 : f32 to vector<8x57xf32>
    %60 = arith.maximumf %58, %59 : vector<8x57xf32>
    %c0_49 = arith.constant 0 : index
    %c133_50 = arith.constant 133 : index
    %61 = vector.load %arg13[%c0_49, %c133_50] : memref<8x456xf32, #tpu.memory_space<vmem>>, vector<8x57xf32>
    tpu.vector_store %arg13[%c0_49, %c133_50], %60 {strides = array<i32>} : memref<8x456xf32, #tpu.memory_space<vmem>>, vector<8x57xf32>,
    %cst_51 = arith.constant 0.000000e+00 : bf16
    %62 = vector.broadcast %cst_51 : bf16 to vector<8x71xbf16>
    %63 = arith.truncf %60 : vector<8x57xf32> to vector<8x57xbf16>
    %64 = tpu.concatenate %63, %62 in 1 : vector<8x57xbf16>, vector<8x71xbf16> -> vector<8x128xbf16>
    %c0_52 = arith.constant 0 : index
    %c190 = arith.constant 190 : index
    %65 = vector.load %arg13[%c0_52, %c190] : memref<8x456xf32, #tpu.memory_space<vmem>>, vector<8x95xf32>
    %c3 = arith.constant 3 : index
    %c0_53 = arith.constant 0 : index
    %c0_54 = arith.constant 0 : index
    %66 = vector.load %arg9[%c3, %c0_53, %c0_54] : memref<8x128x128xbf16, #tpu.memory_space<vmem>>, vector<1x128x128xbf16>
    %67 = vector.shape_cast %66 : vector<1x128x128xbf16> to vector<128x128xbf16>
    %cst_55 = arith.constant dense<0.000000e+00> : vector<8x128xf32>
    %68 = tpu.matmul %64, %67, %cst_55 {dimension_numbers = #tpu.dot_dimension_numbers<[1], [0], [0], [1], [0, 0, 1, 1], [], []>} : vector<8x128xbf16>, vector<128x128xbf16>, vector<8x128xf32> -> vector<8x128xf32>
    %69 = vector.extract_strided_slice %68 {offsets = [0, 0], sizes = [8, 95], strides = [1, 1]} : vector<8x128xf32> to vector<8x95xf32>
    %70 = arith.addf %65, %69 : vector<8x95xf32>
    %cst_56 = arith.constant 0.000000e+00 : f32
    %71 = vector.broadcast %cst_56 : f32 to vector<8x95xf32>
    %72 = arith.maximumf %70, %71 : vector<8x95xf32>
    %c0_57 = arith.constant 0 : index
    %c190_58 = arith.constant 190 : index
    %73 = vector.load %arg13[%c0_57, %c190_58] : memref<8x456xf32, #tpu.memory_space<vmem>>, vector<8x95xf32>
    tpu.vector_store %arg13[%c0_57, %c190_58], %72 {strides = array<i32>} : memref<8x456xf32, #tpu.memory_space<vmem>>, vector<8x95xf32>,
    %cst_59 = arith.constant 0.000000e+00 : bf16
    %74 = vector.broadcast %cst_59 : bf16 to vector<8x33xbf16>
    %75 = arith.truncf %72 : vector<8x95xf32> to vector<8x95xbf16>
    %76 = tpu.concatenate %75, %74 in 1 : vector<8x95xbf16>, vector<8x33xbf16> -> vector<8x128xbf16>
    %c0_60 = arith.constant 0 : index
    %c285 = arith.constant 285 : index
    %77 = vector.load %arg13[%c0_60, %c285] : memref<8x456xf32, #tpu.memory_space<vmem>>, vector<8x57xf32>
    %c4 = arith.constant 4 : index
    %c0_61 = arith.constant 0 : index
    %c0_62 = arith.constant 0 : index
    %78 = vector.load %arg9[%c4, %c0_61, %c0_62] : memref<8x128x128xbf16, #tpu.memory_space<vmem>>, vector<1x128x128xbf16>
    %79 = vector.shape_cast %78 : vector<1x128x128xbf16> to vector<128x128xbf16>
    %cst_63 = arith.constant dense<0.000000e+00> : vector<8x128xf32>
    %80 = tpu.matmul %76, %79, %cst_63 {dimension_numbers = #tpu.dot_dimension_numbers<[1], [0], [0], [1], [0, 0, 1, 1], [], []>} : vector<8x128xbf16>, vector<128x128xbf16>, vector<8x128xf32> -> vector<8x128xf32>
    %81 = vector.extract_strided_slice %80 {offsets = [0, 0], sizes = [8, 57], strides = [1, 1]} : vector<8x128xf32> to vector<8x57xf32>
    %82 = arith.addf %77, %81 : vector<8x57xf32>
    %cst_64 = arith.constant 0.000000e+00 : f32
    %83 = vector.broadcast %cst_64 : f32 to vector<8x57xf32>
    %84 = arith.maximumf %82, %83 : vector<8x57xf32>
    %c0_65 = arith.constant 0 : index
    %c285_66 = arith.constant 285 : index
    %85 = vector.load %arg13[%c0_65, %c285_66] : memref<8x456xf32, #tpu.memory_space<vmem>>, vector<8x57xf32>
    tpu.vector_store %arg13[%c0_65, %c285_66], %84 {strides = array<i32>} : memref<8x456xf32, #tpu.memory_space<vmem>>, vector<8x57xf32>,
    %cst_67 = arith.constant 0.000000e+00 : bf16
    %86 = vector.broadcast %cst_67 : bf16 to vector<8x71xbf16>
    %87 = arith.truncf %84 : vector<8x57xf32> to vector<8x57xbf16>
    %88 = tpu.concatenate %87, %86 in 1 : vector<8x57xbf16>, vector<8x71xbf16> -> vector<8x128xbf16>
    %c0_68 = arith.constant 0 : index
    %c342 = arith.constant 342 : index
    %89 = vector.load %arg13[%c0_68, %c342] : memref<8x456xf32, #tpu.memory_space<vmem>>, vector<8x38xf32>
    %c5 = arith.constant 5 : index
    %c0_69 = arith.constant 0 : index
    %c0_70 = arith.constant 0 : index
    %90 = vector.load %arg9[%c5, %c0_69, %c0_70] : memref<8x128x128xbf16, #tpu.memory_space<vmem>>, vector<1x128x128xbf16>
    %91 = vector.shape_cast %90 : vector<1x128x128xbf16> to vector<128x128xbf16>
    %cst_71 = arith.constant dense<0.000000e+00> : vector<8x128xf32>
    %92 = tpu.matmul %88, %91, %cst_71 {dimension_numbers = #tpu.dot_dimension_numbers<[1], [0], [0], [1], [0, 0, 1, 1], [], []>} : vector<8x128xbf16>, vector<128x128xbf16>, vector<8x128xf32> -> vector<8x128xf32>
    %93 = vector.extract_strided_slice %92 {offsets = [0, 0], sizes = [8, 38], strides = [1, 1]} : vector<8x128xf32> to vector<8x38xf32>
    %94 = arith.addf %89, %93 : vector<8x38xf32>
    %cst_72 = arith.constant 0.000000e+00 : f32
    %95 = vector.broadcast %cst_72 : f32 to vector<8x38xf32>
    %96 = arith.maximumf %94, %95 : vector<8x38xf32>
    %c0_73 = arith.constant 0 : index
    %c342_74 = arith.constant 342 : index
    %97 = vector.load %arg13[%c0_73, %c342_74] : memref<8x456xf32, #tpu.memory_space<vmem>>, vector<8x38xf32>
    tpu.vector_store %arg13[%c0_73, %c342_74], %96 {strides = array<i32>} : memref<8x456xf32, #tpu.memory_space<vmem>>, vector<8x38xf32>,
    %cst_75 = arith.constant 0.000000e+00 : bf16
    %98 = vector.broadcast %cst_75 : bf16 to vector<8x90xbf16>
    %99 = arith.truncf %96 : vector<8x38xf32> to vector<8x38xbf16>
    %100 = tpu.concatenate %99, %98 in 1 : vector<8x38xbf16>, vector<8x90xbf16> -> vector<8x128xbf16>
    %c0_76 = arith.constant 0 : index
    %c380 = arith.constant 380 : index
    %101 = vector.load %arg13[%c0_76, %c380] : memref<8x456xf32, #tpu.memory_space<vmem>>, vector<8x38xf32>
    %c6 = arith.constant 6 : index
    %c0_77 = arith.constant 0 : index
    %c0_78 = arith.constant 0 : index
    %102 = vector.load %arg9[%c6, %c0_77, %c0_78] : memref<8x128x128xbf16, #tpu.memory_space<vmem>>, vector<1x128x128xbf16>
    %103 = vector.shape_cast %102 : vector<1x128x128xbf16> to vector<128x128xbf16>
    %cst_79 = arith.constant dense<0.000000e+00> : vector<8x128xf32>
    %104 = tpu.matmul %100, %103, %cst_79 {dimension_numbers = #tpu.dot_dimension_numbers<[1], [0], [0], [1], [0, 0, 1, 1], [], []>} : vector<8x128xbf16>, vector<128x128xbf16>, vector<8x128xf32> -> vector<8x128xf32>
    %105 = vector.extract_strided_slice %104 {offsets = [0, 0], sizes = [8, 38], strides = [1, 1]} : vector<8x128xf32> to vector<8x38xf32>
    %106 = arith.addf %101, %105 : vector<8x38xf32>
    %cst_80 = arith.constant 0.000000e+00 : f32
    %107 = vector.broadcast %cst_80 : f32 to vector<8x38xf32>
    %108 = arith.maximumf %106, %107 : vector<8x38xf32>
    %c0_81 = arith.constant 0 : index
    %c380_82 = arith.constant 380 : index
    %109 = vector.load %arg13[%c0_81, %c380_82] : memref<8x456xf32, #tpu.memory_space<vmem>>, vector<8x38xf32>
    tpu.vector_store %arg13[%c0_81, %c380_82], %108 {strides = array<i32>} : memref<8x456xf32, #tpu.memory_space<vmem>>, vector<8x38xf32>,
    %cst_83 = arith.constant 0.000000e+00 : bf16
    %110 = vector.broadcast %cst_83 : bf16 to vector<8x90xbf16>
    %111 = arith.truncf %108 : vector<8x38xf32> to vector<8x38xbf16>
    %112 = tpu.concatenate %111, %110 in 1 : vector<8x38xbf16>, vector<8x90xbf16> -> vector<8x128xbf16>
    %c0_84 = arith.constant 0 : index
    %c418 = arith.constant 418 : index
    %113 = vector.load %arg13[%c0_84, %c418] : memref<8x456xf32, #tpu.memory_space<vmem>>, vector<8x38xf32>
    %c7 = arith.constant 7 : index
    %c0_85 = arith.constant 0 : index
    %c0_86 = arith.constant 0 : index
    %114 = vector.load %arg9[%c7, %c0_85, %c0_86] : memref<8x128x128xbf16, #tpu.memory_space<vmem>>, vector<1x128x128xbf16>
    %115 = vector.shape_cast %114 : vector<1x128x128xbf16> to vector<128x128xbf16>
    %cst_87 = arith.constant dense<0.000000e+00> : vector<8x128xf32>
    %116 = tpu.matmul %112, %115, %cst_87 {dimension_numbers = #tpu.dot_dimension_numbers<[1], [0], [0], [1], [0, 0, 1, 1], [], []>} : vector<8x128xbf16>, vector<128x128xbf16>, vector<8x128xf32> -> vector<8x128xf32>
    %117 = vector.extract_strided_slice %116 {offsets = [0, 0], sizes = [8, 38], strides = [1, 1]} : vector<8x128xf32> to vector<8x38xf32>
    %118 = arith.addf %113, %117 : vector<8x38xf32>
    %cst_88 = arith.constant 0.000000e+00 : f32
    %119 = vector.broadcast %cst_88 : f32 to vector<8x38xf32>
    %120 = arith.maximumf %118, %119 : vector<8x38xf32>
    %c0_89 = arith.constant 0 : index
    %c418_90 = arith.constant 418 : index
    %121 = vector.load %arg13[%c0_89, %c418_90] : memref<8x456xf32, #tpu.memory_space<vmem>>, vector<8x38xf32>
    tpu.vector_store %arg13[%c0_89, %c418_90], %120 {strides = array<i32>} : memref<8x456xf32, #tpu.memory_space<vmem>>, vector<8x38xf32>,
    %c0_91 = arith.constant 0 : index
    %c0_92 = arith.constant 0 : index
    %122 = vector.load %arg13[%c0_91, %c0_92] : memref<8x456xf32, #tpu.memory_space<vmem>>, vector<8x456xf32>
    %123 = arith.truncf %122 : vector<8x456xf32> to vector<8x456xbf16>
    %c0_93 = arith.constant 0 : index
    %c0_94 = arith.constant 0 : index
    %124 = vector.load %arg10[%c0_93, %c0_94] : memref<456x144xbf16, #tpu.memory_space<vmem>>, vector<456x144xbf16>
    %cst_95 = arith.constant dense<0.000000e+00> : vector<8x144xf32>
    %125 = tpu.matmul %123, %124, %cst_95 {dimension_numbers = #tpu.dot_dimension_numbers<[1], [0], [0], [1], [0, 0, 1, 1], [], []>} : vector<8x456xbf16>, vector<456x144xbf16>, vector<8x144xf32> -> vector<8x144xf32>
    %c0_96 = arith.constant 0 : index
    %c0_97 = arith.constant 0 : index
    %126 = vector.load %arg11[%c0_96, %c0_97] : memref<1x144xf32, #tpu.memory_space<vmem>>, vector<1x144xf32>
    %127 = vector.broadcast %126 : vector<1x144xf32> to vector<8x144xf32>
    %128 = arith.addf %125, %127 : vector<8x144xf32>
    %c0_98 = arith.constant 0 : index
    %c0_99 = arith.constant 0 : index
    %129 = vector.load %arg12[%c0_98, %c0_99] : memref<8x144xf32, #tpu.memory_space<vmem>>, vector<8x144xf32>
    tpu.vector_store %arg12[%c0_98, %c0_99], %128 {strides = array<i32>} : memref<8x144xf32, #tpu.memory_space<vmem>>, vector<8x144xf32>,
    return
  }
  func.func @transform_0(%arg0: i32) -> (i32, i32) {
    %c0_i32 = arith.constant 0 : i32
    %c0_i32_0 = arith.constant 0 : i32
    return %arg0, %c0_i32 : i32, i32
  }
  func.func @transform_1(%arg0: i32) -> (i32, i32) {
    %c0_i32 = arith.constant 0 : i32
    %c0_i32_0 = arith.constant 0 : i32
    return %arg0, %c0_i32 : i32, i32
  }
  func.func @transform_2(%arg0: i32) -> (i32, i32) {
    %c0_i32 = arith.constant 0 : i32
    %c0_i32_0 = arith.constant 0 : i32
    %c0_i32_1 = arith.constant 0 : i32
    return %c0_i32, %c0_i32_0 : i32, i32
  }
  func.func @transform_3(%arg0: i32) -> (i32, i32) {
    %c0_i32 = arith.constant 0 : i32
    %c0_i32_0 = arith.constant 0 : i32
    %c0_i32_1 = arith.constant 0 : i32
    return %c0_i32, %c0_i32_0 : i32, i32
  }
  func.func @transform_4(%arg0: i32) -> (i32, i32) {
    %c0_i32 = arith.constant 0 : i32
    %c0_i32_0 = arith.constant 0 : i32
    %c0_i32_1 = arith.constant 0 : i32
    return %c0_i32, %c0_i32_0 : i32, i32
  }
  func.func @transform_5(%arg0: i32) -> (i32, i32) {
    %c0_i32 = arith.constant 0 : i32
    %c0_i32_0 = arith.constant 0 : i32
    %c0_i32_1 = arith.constant 0 : i32
    return %c0_i32, %c0_i32_0 : i32, i32
  }
  func.func @transform_6(%arg0: i32) -> (i32, i32) {
    %c0_i32 = arith.constant 0 : i32
    %c0_i32_0 = arith.constant 0 : i32
    %c0_i32_1 = arith.constant 0 : i32
    return %c0_i32, %c0_i32_0 : i32, i32
  }
  func.func @transform_7(%arg0: i32) -> (i32, i32) {
    %c0_i32 = arith.constant 0 : i32
    %c0_i32_0 = arith.constant 0 : i32
    %c0_i32_1 = arith.constant 0 : i32
    return %c0_i32, %c0_i32_0 : i32, i32
  }
  func.func @transform_8(%arg0: i32) -> (i32, i32, i32) {
    %c0_i32 = arith.constant 0 : i32
    %c0_i32_0 = arith.constant 0 : i32
    %c0_i32_1 = arith.constant 0 : i32
    %c0_i32_2 = arith.constant 0 : i32
    return %c0_i32, %c0_i32_0, %c0_i32_1 : i32, i32, i32
  }
  func.func @transform_9(%arg0: i32) -> (i32, i32) {
    %c0_i32 = arith.constant 0 : i32
    %c0_i32_0 = arith.constant 0 : i32
    %c0_i32_1 = arith.constant 0 : i32
    return %c0_i32, %c0_i32_0 : i32, i32
  }
  func.func @transform_10(%arg0: i32) -> (i32, i32) {
    %c0_i32 = arith.constant 0 : i32
    %c0_i32_0 = arith.constant 0 : i32
    %c0_i32_1 = arith.constant 0 : i32
    return %c0_i32, %c0_i32_0 : i32, i32
  }
  func.func @transform_11(%arg0: i32) -> (i32, i32) {
    %c0_i32 = arith.constant 0 : i32
    %c0_i32_0 = arith.constant 0 : i32
    return %arg0, %c0_i32 : i32, i32
  }
}

</mosaic_0001>

<llo_original>
// kernel: hierarchical_pose_encoder.1
$region0: #{hierarchical_pose_encoder.1}
  #allocation0 [shape = 'u32[]', space=smem, size = 0x4, offset = 0x4, fixed_abs, tag = 'smem constant byte address 0x4 - core index']
  #allocation1 [shape = 'u32[144,128]{1,0:T(1,128)}', space=vmem, size = 0x12000, scoped, tag = 'internal scratch']
  #allocation2 [shape = 'f32[8,456]{1,0:T(8,128)}', space=vmem, size = 0x4000, scoped, tag = 'scratch operand']
  %s0 = inlined_call_operand.vmem [shape: bf16[8,216], index: 0, kind: input, shape index: {}]
  %s1 = inlined_call_operand.vmem [shape: bf16[8,72], index: 1, kind: input, shape index: {}]
  %s2 = inlined_call_operand.vmem [shape: bf16[216,456], index: 2, kind: input, shape index: {}]
  %s3 = inlined_call_operand.vmem [shape: bf16[72,456], index: 3, kind: input, shape index: {}]
  %s4 = inlined_call_operand.hbm [shape: bf16[72,72], index: 4, kind: input, shape index: {}]
  %s5 = inlined_call_operand.vmem [shape: bf16[72,24], index: 5, kind: input, shape index: {}]
  %s6 = inlined_call_operand.hbm [shape: bf16[24,456], index: 6, kind: input, shape index: {}]
  %s7 = inlined_call_operand.vmem [shape: f32[1,456], index: 7, kind: input, shape index: {}]
  %s8 = inlined_call_operand.vmem [shape: bf16[8,128,128], index: 8, kind: input, shape index: {}]
  %s9 = inlined_call_operand.vmem [shape: bf16[456,144], index: 9, kind: input, shape index: {}]
  %s10 = inlined_call_operand.vmem [shape: f32[1,144], index: 10, kind: input, shape index: {}]
  %s11 = inlined_call_operand.hbm [shape: f32[8,144], index: 11, kind: output, shape index: {}]
  %s12 = sld [smem:[#allocation0]]
  $region62: #{hierarchical_pose_encoder.1} parent=0
    _
  %s14 = ssub.s32 1, %s12
  %s15 = scalar_select 0, %s14, %s12
  $region1: #{hierarchical_pose_encoder.1} parent=0
    #allocation3 [shape = 'u8[18432]{0}', space=vmem, size = 0x4800, scoped, tag = 'input window, operand 4, single buffered']
    #allocation4 [shape = 's32[1]{0}', space=sflag, size = 0x4, scoped, tag = 'scoped memory for hierarchical_pose_encoder.1']
    #allocation5 [shape = 's32[1]{0}', space=sflag, size = 0x4, scoped, tag = 'scoped memory for hierarchical_pose_encoder.1']
    #allocation6 [shape = 'u8[24576]{0}', space=vmem, size = 0x6000, scoped, tag = 'input window, operand 6, single buffered']
    #allocation7 [shape = 's32[1]{0}', space=sflag, size = 0x4, scoped, tag = 'scoped memory for hierarchical_pose_encoder.1']
    #allocation8 [shape = 'u8[8192]{0}', space=vmem, size = 0x2000, scoped, tag = 'output window, operand 0, single buffered']
    %16 = vsyncpa [#allocation4], 0
    %17 = vsyncpa [#allocation7], 0
    %18 = vsyncpa [#allocation5], 0
    // Predicated region
    $region2: #{hierarchical_pose_encoder.1} parent=1 // pred_check
      _
    $region3: #{hierarchical_pose_encoder.1} parent=1 // pred_check_branch
      %20 = sbr.rel (0) target = $region5
    $region4: #{hierarchical_pose_encoder.1} parent=1 // pred_region
      _
    $region5: #{hierarchical_pose_encoder.1} parent=1 // pred_fallthru
      _
    // Predicated region
    $region6: #{hierarchical_pose_encoder.1} parent=1 // pred_check
      _
    $region7: #{hierarchical_pose_encoder.1} parent=1 // pred_check_branch
      %22 = sbr.rel (0) target = $region9
    $region8: #{hierarchical_pose_encoder.1} parent=1 // pred_region
      _
    $region9: #{hierarchical_pose_encoder.1} parent=1 // pred_fallthru
      _
    // Predicated region
    $region10: #{hierarchical_pose_encoder.1} parent=1 // pred_check
      _
    $region11: #{hierarchical_pose_encoder.1} parent=1 // pred_check_branch
      %24 = sbr.rel (0) target = $region13
    $region12: #{hierarchical_pose_encoder.1} parent=1 // pred_region
      _
    $region13: #{hierarchical_pose_encoder.1} parent=1 // pred_fallthru
      _
    // Predicated region
    $region14: #{hierarchical_pose_encoder.1} parent=1 // pred_check
      _
    $region15: #{hierarchical_pose_encoder.1} parent=1 // pred_check_branch
      %26 = sbr.rel (0) target = $region17
    $region16: #{hierarchical_pose_encoder.1} parent=1 // pred_region
      _
    $region17: #{hierarchical_pose_encoder.1} parent=1 // pred_fallthru
      _
    // Predicated region
    $region18: #{hierarchical_pose_encoder.1} parent=1 // pred_check
      _
    $region19: #{hierarchical_pose_encoder.1} parent=1 // pred_check_branch
      %28 = sbr.rel (0) target = $region21
    $region20: #{hierarchical_pose_encoder.1} parent=1 // pred_region
      %s30 = ssub.s32 576, 576
      %31 = vsyncadd [#allocation4], %s30
      %s32 = sshll.u32 [#allocation3], 4
      %s33 = int_to_ptr.vmem [resolvable:$true] %s32
      %38 = dma.hbm_to_vmem [thread:$0]  %s4, 576, %s33, [#allocation4], 64, 64, 4
    $region21: #{hierarchical_pose_encoder.1} parent=1 // pred_fallthru
      _
    // Predicated region
    $region22: #{hierarchical_pose_encoder.1} parent=1 // pred_check
      _
    $region23: #{hierarchical_pose_encoder.1} parent=1 // pred_check_branch
      %40 = sbr.rel (0) target = $region25
    $region24: #{hierarchical_pose_encoder.1} parent=1 // pred_region
      _
    $region25: #{hierarchical_pose_encoder.1} parent=1 // pred_fallthru
      _
    // Predicated region
    $region26: #{hierarchical_pose_encoder.1} parent=1 // pred_check
      _
    $region27: #{hierarchical_pose_encoder.1} parent=1 // pred_check_branch
      %42 = sbr.rel (0) target = $region29
    $region28: #{hierarchical_pose_encoder.1} parent=1 // pred_region
      %s44 = ssub.s32 768, 768
      %45 = vsyncadd [#allocation7], %s44
      %s46 = sshll.u32 [#allocation6], 4
      %s47 = int_to_ptr.vmem [resolvable:$true] %s46
      %52 = dma.hbm_to_vmem [thread:$0]  %s6, 768, %s47, [#allocation7], 256, 256, 16
    $region29: #{hierarchical_pose_encoder.1} parent=1 // pred_fallthru
      _
    // Predicated region
    $region30: #{hierarchical_pose_encoder.1} parent=1 // pred_check
      _
    $region31: #{hierarchical_pose_encoder.1} parent=1 // pred_check_branch
      %54 = sbr.rel (0) target = $region33
    $region32: #{hierarchical_pose_encoder.1} parent=1 // pred_region
      _
    $region33: #{hierarchical_pose_encoder.1} parent=1 // pred_fallthru
      _
    // Predicated region
    $region34: #{hierarchical_pose_encoder.1} parent=1 // pred_check
      _
    $region35: #{hierarchical_pose_encoder.1} parent=1 // pred_check_branch
      %56 = sbr.rel (0) target = $region37
    $region36: #{hierarchical_pose_encoder.1} parent=1 // pred_region
      _
    $region37: #{hierarchical_pose_encoder.1} parent=1 // pred_fallthru
      _
    // Predicated region
    $region38: #{hierarchical_pose_encoder.1} parent=1 // pred_check
      _
    $region39: #{hierarchical_pose_encoder.1} parent=1 // pred_check_branch
      %58 = sbr.rel (0) target = $region41
    $region40: #{hierarchical_pose_encoder.1} parent=1 // pred_region
      _
    $region41: #{hierarchical_pose_encoder.1} parent=1 // pred_fallthru
      _
    // Predicated region
    $region42: #{hierarchical_pose_encoder.1} parent=1 // pred_check
      _
    $region43: #{hierarchical_pose_encoder.1} parent=1 // pred_check_branch
      %60 = sbr.rel (0) target = $region45
    $region44: #{hierarchical_pose_encoder.1} parent=1 // pred_region
      _
    $region45: #{hierarchical_pose_encoder.1} parent=1 // pred_fallthru
      _
    // Predicated region
    $region46: #{hierarchical_pose_encoder.1} parent=1 // pred_check
      _
    $region47: #{hierarchical_pose_encoder.1} parent=1 // pred_check_branch
      %62 = sbr.rel (0) target = $region49
    $region48: #{hierarchical_pose_encoder.1} parent=1 // pred_region
      %63 = dma.done [#allocation4], 576
    $region49: #{hierarchical_pose_encoder.1} parent=1 // pred_fallthru
      _
    // Predicated region
    $region50: #{hierarchical_pose_encoder.1} parent=1 // pred_check
      _
    $region51: #{hierarchical_pose_encoder.1} parent=1 // pred_check_branch
      %65 = sbr.rel (0) target = $region53
    $region52: #{hierarchical_pose_encoder.1} parent=1 // pred_region
      %66 = dma.done [#allocation7], 768
    $region53: #{hierarchical_pose_encoder.1} parent=1 // pred_fallthru
      _
    %v68 = vld [vmem:[%s0] sm:$0xff]
    %v69 = vld [vmem:[%s1] sm:$0xf]
    %v70 = vld [vmem:[#allocation3] sm:$0xf]
    %v71 = vld [vmem:[#allocation3 + $0x4] sm:$0xf]
    %v72 = vld [vmem:[#allocation3 + $0x8] sm:$0xf]
    %v73 = vld [vmem:[#allocation3 + $0xc] sm:$0xf]
    %v74 = vld [vmem:[#allocation3 + $0x10] sm:$0xf]
    %v75 = vld [vmem:[#allocation3 + $0x14] sm:$0xf]
    %v76 = vld [vmem:[#allocation3 + $0x18] sm:$0xf]
    %v77 = vld [vmem:[#allocation3 + $0x1c] sm:$0xf]
    %v78 = vld [vmem:[#allocation3 + $0x20] sm:$0xf]
    %v88 = vunpack.c.l.b16 %v70
    %v89 = vunpack.c.l.b16 %v71
    %v90 = vunpack.c.l.b16 %v72
    %v91 = vunpack.c.l.b16 %v73
    %v92 = vunpack.c.l.b16 %v74
    %v93 = vunpack.c.l.b16 %v75
    %v94 = vunpack.c.l.b16 %v76
    %v95 = vunpack.c.l.b16 %v77
    %v96 = vunpack.c.l.b16 %v78
    %v97 = vpack.c.b16 %v89, %v88
    %v98 = vpack.c.b16 %v91, %v90
    %v99 = vpack.c.b16 %v93, %v92
    %v100 = vpack.c.b16 %v95, %v94
    %v101 = vpack.c.b16 %v96, %v96
    %vm106 = vcmask 588800
    %v108 = vsel %vm106, %v69, 0
    %vm110 = vcmask 1043456
    %v112 = vsel %vm110, %v101, 0
    %114 = vmatprep.subr.bf16.mxu0 0
    %115 = vmatpush1.bf16.msra.mxu0 %v97
    %116 = vmatprep.subr.bf16.mxu0 0
    %117 = vmatpush1.bf16.msra.mxu0 %v98
    %118 = vmatprep.subr.bf16.mxu0 0
    %119 = vmatpush1.bf16.msra.mxu0 %v99
    %120 = vmatprep.subr.bf16.mxu0 0
    %121 = vmatpush1.bf16.msra.mxu0 %v100
    %122 = vmatprep.subr.bf16.mxu0 0
    %123 = vmatpush1.bf16.msra.mxu0 %v112
    %124 = vmatprep.subr.bf16.mxu0 0
    %125 = vmatpush1.bf16.msra.mxu0 0
    %126 = vmatprep.subr.bf16.mxu0 0
    %127 = vmatpush1.bf16.msra.mxu0 0
    %128 = vmatprep.subr.bf16.mxu0 0
    %129 = vmatpush1.bf16.msra.mxu0 0
    %130 = vmatprep.subr.bf16.mxu0 0
    %131 = vmatpush1.bf16.msra.mxu0 0
    %132 = vmatprep.subr.bf16.mxu0 0
    %133 = vmatpush1.bf16.msra.mxu0 0
    %134 = vmatprep.subr.bf16.mxu0 0
    %135 = vmatpush1.bf16.msra.mxu0 0
    %136 = vmatprep.subr.bf16.mxu0 0
    %137 = vmatpush1.bf16.msra.mxu0 0
    %138 = vmatprep.subr.bf16.mxu0 0
    %139 = vmatpush1.bf16.msra.mxu0 0
    %140 = vmatprep.subr.bf16.mxu0 0
    %141 = vmatpush1.bf16.msra.mxu0 0
    %142 = vmatprep.subr.bf16.mxu0 0
    %143 = vmatpush1.bf16.msra.mxu0 0
    %144 = vmatprep.subr.bf16.mxu0 0
    %145 = vmatpush1.bf16.msra.mxu0 0
    %146 = vmatprep.mubr.bf16.mxu0 0
    %147 = vmatmul.mubr.bf16.gmra.mrb[0].mxu0 %v108
    %v148 = vpop.f32.mrb[0].mxu0
    %v149 = vadd.f32 0.0, %v148
    %v150 = vpop.f32.mrb[0].mxu0
    %v151 = vpop.f32.mrb[0].mxu0
    %v152 = vpop.f32.mrb[0].mxu0
    %153 = vdwg.mxu0
    %v154 = vmul.f32 %v149, %v149
    %v155 = vpack.c.bf16 %v154, %v154
    %v156 = vld [vmem:[%s5] sm:$0xf]
    %v157 = vld [vmem:[%s5 + $0x4] sm:$0xf]
    %v158 = vld [vmem:[%s5 + $0x8] sm:$0xf]
    %v159 = vld [vmem:[%s5 + $0xc] sm:$0xf]
    %v160 = vld [vmem:[%s5 + $0x10] sm:$0xf]
    %v161 = vld [vmem:[%s5 + $0x14] sm:$0xf]
    %v162 = vld [vmem:[%s5 + $0x18] sm:$0xf]
    %v163 = vld [vmem:[%s5 + $0x1c] sm:$0xf]
    %v164 = vld [vmem:[%s5 + $0x20] sm:$0xf]
    %v174 = vunpack.c.l.b16 %v156
    %v175 = vunpack.c.l.b16 %v157
    %v176 = vunpack.c.l.b16 %v158
    %v177 = vunpack.c.l.b16 %v159
    %v178 = vunpack.c.l.b16 %v160
    %v179 = vunpack.c.l.b16 %v161
    %v180 = vunpack.c.l.b16 %v162
    %v181 = vunpack.c.l.b16 %v163
    %v182 = vunpack.c.l.b16 %v164
    %v183 = vpack.c.b16 %v175, %v174
    %v184 = vpack.c.b16 %v177, %v176
    %v185 = vpack.c.b16 %v179, %v178
    %v186 = vpack.c.b16 %v181, %v180
    %v187 = vpack.c.b16 %v182, %v182
    %v193 = vsel %vm106, %v155, 0
    %v196 = vsel %vm110, %v187, 0
    %198 = vmatprep.subr.bf16.mxu0 0
    %199 = vmatpush1.bf16.msra.mxu0 %v183
    %200 = vmatprep.subr.bf16.mxu0 0
    %201 = vmatpush1.bf16.msra.mxu0 %v184
    %202 = vmatprep.subr.bf16.mxu0 0
    %203 = vmatpush1.bf16.msra.mxu0 %v185
    %204 = vmatprep.subr.bf16.mxu0 0
    %205 = vmatpush1.bf16.msra.mxu0 %v186
    %206 = vmatprep.subr.bf16.mxu0 0
    %207 = vmatpush1.bf16.msra.mxu0 %v196
    %208 = vmatprep.subr.bf16.mxu0 0
    %209 = vmatpush1.bf16.msra.mxu0 0
    %210 = vmatprep.subr.bf16.mxu0 0
    %211 = vmatpush1.bf16.msra.mxu0 0
    %212 = vmatprep.subr.bf16.mxu0 0
    %213 = vmatpush1.bf16.msra.mxu0 0
    %214 = vmatprep.subr.bf16.mxu0 0
    %215 = vmatpush1.bf16.msra.mxu0 0
    %216 = vmatprep.subr.bf16.mxu0 0
    %217 = vmatpush1.bf16.msra.mxu0 0
    %218 = vmatprep.subr.bf16.mxu0 0
    %219 = vmatpush1.bf16.msra.mxu0 0
    %220 = vmatprep.subr.bf16.mxu0 0
    %221 = vmatpush1.bf16.msra.mxu0 0
    %222 = vmatprep.subr.bf16.mxu0 0
    %223 = vmatpush1.bf16.msra.mxu0 0
    %224 = vmatprep.subr.bf16.mxu0 0
    %225 = vmatpush1.bf16.msra.mxu0 0
    %226 = vmatprep.subr.bf16.mxu0 0
    %227 = vmatpush1.bf16.msra.mxu0 0
    %228 = vmatprep.subr.bf16.mxu0 0
    %229 = vmatpush1.bf16.msra.mxu0 0
    %230 = vmatprep.mubr.bf16.mxu0 0
    %231 = vmatmul.mubr.bf16.gmra.mrb[0].mxu0 %v193
    %v232 = vpop.f32.mrb[0].mxu0
    %v233 = vadd.f32 0.0, %v232
    %v234 = vpop.f32.mrb[0].mxu0
    %v235 = vpop.f32.mrb[0].mxu0
    %v236 = vpop.f32.mrb[0].mxu0
    %237 = vdwg.mxu0
    %v238 = vrsqrt.pop %v233
    %v239 = vmul.f32 %v233, %v238
    %vm240 = vcmp.eq.f32.partialorder %v233, inf
    %v241 = vsel %vm240, %v233, %v239
    %vm242 = vcmp.eq.f32.partialorder %v233, 0.0
    %v243 = vand.u32 %v233, 2147483648
    %v244 = vsel %vm242, %v243, %v241
    %v245 = vld [vmem:[%s2] sm:$0xff]
    %v246 = vld [vmem:[%s2 + $0x8] sm:$0xff]
    %v247 = vld [vmem:[%s2 + $0x10] sm:$0xff]
    %v248 = vld [vmem:[%s2 + $0x18] sm:$0xff]
    %v249 = vld [vmem:[%s2 + $0x20] sm:$0xff]
    %v250 = vld [vmem:[%s2 + $0x28] sm:$0xff]
    %v251 = vld [vmem:[%s2 + $0x30] sm:$0xff]
    %v252 = vld [vmem:[%s2 + $0x38] sm:$0xff]
    %v253 = vld [vmem:[%s2 + $0x40] sm:$0xff]
    %v254 = vld [vmem:[%s2 + $0x48] sm:$0xff]
    %v255 = vld [vmem:[%s2 + $0x50] sm:$0xff]
    %v256 = vld [vmem:[%s2 + $0x58] sm:$0xff]
    %v257 = vld [vmem:[%s2 + $0x60] sm:$0xff]
    %v258 = vld [vmem:[%s2 + $0x68] sm:$0xff]
    %v259 = vld [vmem:[%s2 + $0x70] sm:$0xff]
    %v260 = vld [vmem:[%s2 + $0x78] sm:$0xff]
    %v261 = vld [vmem:[%s2 + $0x80] sm:$0xff]
    %v262 = vld [vmem:[%s2 + $0x88] sm:$0xff]
    %v263 = vld [vmem:[%s2 + $0x90] sm:$0xff]
    %v264 = vld [vmem:[%s2 + $0x98] sm:$0xff]
    %v265 = vld [vmem:[%s2 + $0xa0] sm:$0xff]
    %v266 = vld [vmem:[%s2 + $0xa8] sm:$0xff]
    %v267 = vld [vmem:[%s2 + $0xb0] sm:$0xff]
    %v268 = vld [vmem:[%s2 + $0xb8] sm:$0xff]
    %v269 = vld [vmem:[%s2 + $0xc0] sm:$0xff]
    %v270 = vld [vmem:[%s2 + $0xc8] sm:$0xff]
    %v271 = vld [vmem:[%s2 + $0xd0] sm:$0xff]
    %v272 = vld [vmem:[%s2 + $0xd8] sm:$0xff]
    %v273 = vld [vmem:[%s2 + $0xe0] sm:$0xff]
    %v274 = vld [vmem:[%s2 + $0xe8] sm:$0xff]
    %v275 = vld [vmem:[%s2 + $0xf0] sm:$0xff]
    %v276 = vld [vmem:[%s2 + $0xf8] sm:$0xff]
    %v277 = vld [vmem:[%s2 + $0x100] sm:$0xff]
    %v278 = vld [vmem:[%s2 + $0x108] sm:$0xff]
    %v279 = vld [vmem:[%s2 + $0x110] sm:$0xff]
    %v280 = vld [vmem:[%s2 + $0x118] sm:$0xff]
    %v281 = vld [vmem:[%s2 + $0x120] sm:$0xff]
    %v282 = vld [vmem:[%s2 + $0x128] sm:$0xff]
    %v283 = vld [vmem:[%s2 + $0x130] sm:$0xff]
    %v284 = vld [vmem:[%s2 + $0x138] sm:$0xff]
    %v285 = vld [vmem:[%s2 + $0x140] sm:$0xff]
    %v286 = vld [vmem:[%s2 + $0x148] sm:$0xff]
    %v287 = vld [vmem:[%s2 + $0x150] sm:$0xff]
    %v288 = vld [vmem:[%s2 + $0x158] sm:$0xff]
    %v289 = vld [vmem:[%s2 + $0x160] sm:$0xff]
    %v290 = vld [vmem:[%s2 + $0x168] sm:$0xff]
    %v291 = vld [vmem:[%s2 + $0x170] sm:$0xff]
    %v292 = vld [vmem:[%s2 + $0x178] sm:$0xff]
    %v293 = vld [vmem:[%s2 + $0x180] sm:$0xff]
    %v294 = vld [vmem:[%s2 + $0x188] sm:$0xff]
    %v295 = vld [vmem:[%s2 + $0x190] sm:$0xff]
    %v296 = vld [vmem:[%s2 + $0x198] sm:$0xff]
    %v297 = vld [vmem:[%s2 + $0x1a0] sm:$0xff]
    %v298 = vld [vmem:[%s2 + $0x1a8] sm:$0xff]
    %v299 = vld [vmem:[%s3] sm:$0xff]
    %v300 = vld [vmem:[%s3 + $0x8] sm:$0xff]
    %v301 = vld [vmem:[%s3 + $0x10] sm:$0xff]
    %v302 = vld [vmem:[%s3 + $0x18] sm:$0xff]
    %v303 = vld [vmem:[%s3 + $0x20] sm:$0xff]
    %v304 = vld [vmem:[%s3 + $0x28] sm:$0xff]
    %v305 = vld [vmem:[%s3 + $0x30] sm:$0xff]
    %v306 = vld [vmem:[%s3 + $0x38] sm:$0xff]
    %v307 = vld [vmem:[%s3 + $0x40] sm:$0xff]
    %v308 = vld [vmem:[%s3 + $0x48] sm:$0xff]
    %v309 = vld [vmem:[%s3 + $0x50] sm:$0xff]
    %v310 = vld [vmem:[%s3 + $0x58] sm:$0xff]
    %v311 = vld [vmem:[%s3 + $0x60] sm:$0xff]
    %v312 = vld [vmem:[%s3 + $0x68] sm:$0xff]
    %v313 = vld [vmem:[%s3 + $0x70] sm:$0xff]
    %v314 = vld [vmem:[%s3 + $0x78] sm:$0xff]
    %v315 = vld [vmem:[%s3 + $0x80] sm:$0xff]
    %v316 = vld [vmem:[%s3 + $0x88] sm:$0xff]
    %v335 = vunpack.c.l.b16 %v299
    %v336 = vunpack.c.h.b16 %v299
    %v337 = vunpack.c.l.b16 %v300
    %v338 = vunpack.c.h.b16 %v300
    %v339 = vunpack.c.l.b16 %v301
    %v340 = vunpack.c.h.b16 %v301
    %v341 = vunpack.c.l.b16 %v302
    %v342 = vunpack.c.h.b16 %v302
    %v343 = vunpack.c.l.b16 %v303
    %v344 = vunpack.c.h.b16 %v303
    %v345 = vunpack.c.l.b16 %v304
    %v346 = vunpack.c.h.b16 %v304
    %v347 = vunpack.c.l.b16 %v305
    %v348 = vunpack.c.h.b16 %v305
    %v349 = vunpack.c.l.b16 %v306
    %v350 = vunpack.c.h.b16 %v306
    %v351 = vunpack.c.l.b16 %v307
    %v352 = vunpack.c.h.b16 %v307
    %v353 = vunpack.c.l.b16 %v308
    %v354 = vunpack.c.h.b16 %v308
    %v355 = vunpack.c.l.b16 %v309
    %v356 = vunpack.c.h.b16 %v309
    %v357 = vunpack.c.l.b16 %v310
    %v358 = vunpack.c.h.b16 %v310
    %v359 = vunpack.c.l.b16 %v311
    %v360 = vunpack.c.h.b16 %v311
    %v361 = vunpack.c.l.b16 %v312
    %v362 = vunpack.c.h.b16 %v312
    %v363 = vunpack.c.l.b16 %v313
    %v364 = vunpack.c.h.b16 %v313
    %v365 = vunpack.c.l.b16 %v314
    %v366 = vunpack.c.h.b16 %v314
    %v367 = vunpack.c.l.b16 %v315
    %v368 = vunpack.c.h.b16 %v315
    %v369 = vunpack.c.l.b16 %v316
    %v370 = vunpack.c.h.b16 %v316
    %v371 = vpack.c.b16 %v339, %v335
    %v372 = vpack.c.b16 %v340, %v336
    %v373 = vpack.c.b16 %v341, %v337
    %v374 = vpack.c.b16 %v342, %v338
    %v375 = vpack.c.b16 %v347, %v343
    %v376 = vpack.c.b16 %v348, %v344
    %v377 = vpack.c.b16 %v349, %v345
    %v378 = vpack.c.b16 %v350, %v346
    %v379 = vpack.c.b16 %v355, %v351
    %v380 = vpack.c.b16 %v356, %v352
    %v381 = vpack.c.b16 %v357, %v353
    %v382 = vpack.c.b16 %v358, %v354
    %v383 = vpack.c.b16 %v363, %v359
    %v384 = vpack.c.b16 %v364, %v360
    %v385 = vpack.c.b16 %v365, %v361
    %v386 = vpack.c.b16 %v366, %v362
    %v387 = vpack.c.b16 %v367, %v367
    %v388 = vpack.c.b16 %v368, %v368
    %v389 = vpack.c.b16 %v369, %v369
    %v390 = vpack.c.b16 %v370, %v370
    %v408 = vsel %vm110, %v387, 0
    %v411 = vsel %vm110, %v388, 0
    %v414 = vsel %vm110, %v389, 0
    %v417 = vsel %vm110, %v390, 0
    %419 = vmatprep.subr.bf16.mxu0 %v372
    %420 = vmatpush1.bf16.msra.mxu0 %v371
    %421 = vmatprep.subr.bf16.mxu0 %v376
    %422 = vmatpush1.bf16.msra.mxu0 %v375
    %423 = vmatprep.subr.bf16.mxu0 %v380
    %424 = vmatpush1.bf16.msra.mxu0 %v379
    %425 = vmatprep.subr.bf16.mxu0 %v384
    %426 = vmatpush1.bf16.msra.mxu0 %v383
    %427 = vmatprep.subr.bf16.mxu0 %v411
    %428 = vmatpush1.bf16.msra.mxu0 %v408
    %429 = vmatprep.subr.bf16.mxu0 0
    %430 = vmatpush1.bf16.msra.mxu0 0
    %431 = vmatprep.subr.bf16.mxu0 0
    %432 = vmatpush1.bf16.msra.mxu0 0
    %433 = vmatprep.subr.bf16.mxu0 0
    %434 = vmatpush1.bf16.msra.mxu0 0
    %435 = vmatprep.subr.bf16.mxu0 0
    %436 = vmatpush1.bf16.msra.mxu0 0
    %437 = vmatprep.subr.bf16.mxu0 0
    %438 = vmatpush1.bf16.msra.mxu0 0
    %439 = vmatprep.subr.bf16.mxu0 0
    %440 = vmatpush1.bf16.msra.mxu0 0
    %441 = vmatprep.subr.bf16.mxu0 0
    %442 = vmatpush1.bf16.msra.mxu0 0
    %443 = vmatprep.subr.bf16.mxu0 0
    %444 = vmatpush1.bf16.msra.mxu0 0
    %445 = vmatprep.subr.bf16.mxu0 0
    %446 = vmatpush1.bf16.msra.mxu0 0
    %447 = vmatprep.subr.bf16.mxu0 0
    %448 = vmatpush1.bf16.msra.mxu0 0
    %449 = vmatprep.subr.bf16.mxu0 0
    %450 = vmatpush1.bf16.msra.mxu0 0
    %451 = vmatprep.mubr.bf16.mxu0 0
    %452 = vmatmul.mubr.bf16.gmra.mrb[0].mxu0 %v108
    %v453 = vpop.f32.mrb[0].mxu0
    %v454 = vadd.f32 0.0, %v453
    %v455 = vpop.f32.mrb[0].mxu0
    %v456 = vadd.f32 0.0, %v455
    %v457 = vpop.f32.mrb[0].mxu0
    %v458 = vpop.f32.mrb[0].mxu0
    %459 = vdwg.mxu0
    %460 = vmatprep.subr.bf16.mxu0 %v374
    %461 = vmatpush1.bf16.msra.mxu0 %v373
    %462 = vmatprep.subr.bf16.mxu0 %v378
    %463 = vmatpush1.bf16.msra.mxu0 %v377
    %464 = vmatprep.subr.bf16.mxu0 %v382
    %465 = vmatpush1.bf16.msra.mxu0 %v381
    %466 = vmatprep.subr.bf16.mxu0 %v386
    %467 = vmatpush1.bf16.msra.mxu0 %v385
    %468 = vmatprep.subr.bf16.mxu0 %v417
    %469 = vmatpush1.bf16.msra.mxu0 %v414
    %470 = vmatprep.subr.bf16.mxu0 0
    %471 = vmatpush1.bf16.msra.mxu0 0
    %472 = vmatprep.subr.bf16.mxu0 0
    %473 = vmatpush1.bf16.msra.mxu0 0
    %474 = vmatprep.subr.bf16.mxu0 0
    %475 = vmatpush1.bf16.msra.mxu0 0
    %476 = vmatprep.subr.bf16.mxu0 0
    %477 = vmatpush1.bf16.msra.mxu0 0
    %478 = vmatprep.subr.bf16.mxu0 0
    %479 = vmatpush1.bf16.msra.mxu0 0
    %480 = vmatprep.subr.bf16.mxu0 0
    %481 = vmatpush1.bf16.msra.mxu0 0
    %482 = vmatprep.subr.bf16.mxu0 0
    %483 = vmatpush1.bf16.msra.mxu0 0
    %484 = vmatprep.subr.bf16.mxu0 0
    %485 = vmatpush1.bf16.msra.mxu0 0
    %486 = vmatprep.subr.bf16.mxu0 0
    %487 = vmatpush1.bf16.msra.mxu0 0
    %488 = vmatprep.subr.bf16.mxu0 0
    %489 = vmatpush1.bf16.msra.mxu0 0
    %490 = vmatprep.subr.bf16.mxu0 0
    %491 = vmatpush1.bf16.msra.mxu0 0
    %492 = vmatprep.mubr.bf16.mxu0 0
    %493 = vmatmul.mubr.bf16.gmra.mrb[0].mxu0 %v108
    %v494 = vpop.f32.mrb[0].mxu0
    %v495 = vadd.f32 0.0, %v494
    %v496 = vpop.f32.mrb[0].mxu0
    %v497 = vadd.f32 0.0, %v496
    %v498 = vpop.f32.mrb[0].mxu0
    %v499 = vpop.f32.mrb[0].mxu0
    %500 = vdwg.mxu0
    %v502 = vunpack.c.l.b16 %v68
    %v503 = vunpack.c.h.b16 %v68
    %v504 = vpack.c.b16 %v502, %v502
    %v505 = vpack.c.b16 %v503, %v503
    %v561 = vunpack.c.l.b16 %v245
    %v562 = vunpack.c.h.b16 %v245
    %v563 = vunpack.c.l.b16 %v246
    %v564 = vunpack.c.h.b16 %v246
    %v565 = vunpack.c.l.b16 %v247
    %v566 = vunpack.c.h.b16 %v247
    %v567 = vunpack.c.l.b16 %v248
    %v568 = vunpack.c.h.b16 %v248
    %v569 = vunpack.c.l.b16 %v249
    %v570 = vunpack.c.h.b16 %v249
    %v571 = vunpack.c.l.b16 %v250
    %v572 = vunpack.c.h.b16 %v250
    %v573 = vunpack.c.l.b16 %v251
    %v574 = vunpack.c.h.b16 %v251
    %v575 = vunpack.c.l.b16 %v252
    %v576 = vunpack.c.h.b16 %v252
    %v577 = vunpack.c.l.b16 %v253
    %v578 = vunpack.c.h.b16 %v253
    %v579 = vunpack.c.l.b16 %v254
    %v580 = vunpack.c.h.b16 %v254
    %v581 = vunpack.c.l.b16 %v255
    %v582 = vunpack.c.h.b16 %v255
    %v583 = vunpack.c.l.b16 %v256
    %v584 = vunpack.c.h.b16 %v256
    %v585 = vunpack.c.l.b16 %v257
    %v586 = vunpack.c.h.b16 %v257
    %v587 = vunpack.c.l.b16 %v258
    %v588 = vunpack.c.h.b16 %v258
    %v589 = vunpack.c.l.b16 %v259
    %v590 = vunpack.c.h.b16 %v259
    %v591 = vunpack.c.l.b16 %v260
    %v592 = vunpack.c.h.b16 %v260
    %v593 = vunpack.c.l.b16 %v261
    %v594 = vunpack.c.h.b16 %v261
    %v595 = vunpack.c.l.b16 %v262
    %v596 = vunpack.c.h.b16 %v262
    %v597 = vunpack.c.l.b16 %v263
    %v598 = vunpack.c.h.b16 %v263
    %v599 = vunpack.c.l.b16 %v264
    %v600 = vunpack.c.h.b16 %v264
    %v601 = vunpack.c.l.b16 %v265
    %v602 = vunpack.c.h.b16 %v265
    %v603 = vunpack.c.l.b16 %v266
    %v604 = vunpack.c.h.b16 %v266
    %v605 = vunpack.c.l.b16 %v267
    %v606 = vunpack.c.h.b16 %v267
    %v607 = vunpack.c.l.b16 %v268
    %v608 = vunpack.c.h.b16 %v268
    %v609 = vunpack.c.l.b16 %v269
    %v610 = vunpack.c.h.b16 %v269
    %v611 = vunpack.c.l.b16 %v270
    %v612 = vunpack.c.h.b16 %v270
    %v613 = vunpack.c.l.b16 %v271
    %v614 = vunpack.c.h.b16 %v271
    %v615 = vunpack.c.l.b16 %v272
    %v616 = vunpack.c.h.b16 %v272
    %v617 = vunpack.c.l.b16 %v273
    %v618 = vunpack.c.h.b16 %v273
    %v619 = vunpack.c.l.b16 %v274
    %v620 = vunpack.c.h.b16 %v274
    %v621 = vunpack.c.l.b16 %v275
    %v622 = vunpack.c.h.b16 %v275
    %v623 = vunpack.c.l.b16 %v276
    %v624 = vunpack.c.h.b16 %v276
    %v625 = vunpack.c.l.b16 %v277
    %v626 = vunpack.c.h.b16 %v277
    %v627 = vunpack.c.l.b16 %v278
    %v628 = vunpack.c.h.b16 %v278
    %v629 = vunpack.c.l.b16 %v279
    %v630 = vunpack.c.h.b16 %v279
    %v631 = vunpack.c.l.b16 %v280
    %v632 = vunpack.c.h.b16 %v280
    %v633 = vunpack.c.l.b16 %v281
    %v634 = vunpack.c.h.b16 %v281
    %v635 = vunpack.c.l.b16 %v282
    %v636 = vunpack.c.h.b16 %v282
    %v637 = vunpack.c.l.b16 %v283
    %v638 = vunpack.c.h.b16 %v283
    %v639 = vunpack.c.l.b16 %v284
    %v640 = vunpack.c.h.b16 %v284
    %v641 = vunpack.c.l.b16 %v285
    %v642 = vunpack.c.h.b16 %v285
    %v643 = vunpack.c.l.b16 %v286
    %v644 = vunpack.c.h.b16 %v286
    %v645 = vunpack.c.l.b16 %v287
    %v646 = vunpack.c.h.b16 %v287
    %v647 = vunpack.c.l.b16 %v288
    %v648 = vunpack.c.h.b16 %v288
    %v649 = vunpack.c.l.b16 %v289
    %v650 = vunpack.c.h.b16 %v289
    %v651 = vunpack.c.l.b16 %v290
    %v652 = vunpack.c.h.b16 %v290
    %v653 = vunpack.c.l.b16 %v291
    %v654 = vunpack.c.h.b16 %v291
    %v655 = vunpack.c.l.b16 %v292
    %v656 = vunpack.c.h.b16 %v292
    %v657 = vunpack.c.l.b16 %v293
    %v658 = vunpack.c.h.b16 %v293
    %v659 = vunpack.c.l.b16 %v294
    %v660 = vunpack.c.h.b16 %v294
    %v661 = vunpack.c.l.b16 %v295
    %v662 = vunpack.c.h.b16 %v295
    %v663 = vunpack.c.l.b16 %v296
    %v664 = vunpack.c.h.b16 %v296
    %v665 = vunpack.c.l.b16 %v297
    %v666 = vunpack.c.h.b16 %v297
    %v667 = vunpack.c.l.b16 %v298
    %v668 = vunpack.c.h.b16 %v298
    %v669 = vpack.c.b16 %v565, %v561
    %v670 = vpack.c.b16 %v566, %v562
    %v671 = vpack.c.b16 %v567, %v563
    %v672 = vpack.c.b16 %v568, %v564
    %v673 = vpack.c.b16 %v573, %v569
    %v674 = vpack.c.b16 %v574, %v570
    %v675 = vpack.c.b16 %v575, %v571
    %v676 = vpack.c.b16 %v576, %v572
    %v677 = vpack.c.b16 %v581, %v577
    %v678 = vpack.c.b16 %v582, %v578
    %v679 = vpack.c.b16 %v583, %v579
    %v680 = vpack.c.b16 %v584, %v580
    %v681 = vpack.c.b16 %v589, %v585
    %v682 = vpack.c.b16 %v590, %v586
    %v683 = vpack.c.b16 %v591, %v587
    %v684 = vpack.c.b16 %v592, %v588
    %v685 = vpack.c.b16 %v597, %v593
    %v686 = vpack.c.b16 %v598, %v594
    %v687 = vpack.c.b16 %v599, %v595
    %v688 = vpack.c.b16 %v600, %v596
    %v689 = vpack.c.b16 %v605, %v601
    %v690 = vpack.c.b16 %v606, %v602
    %v691 = vpack.c.b16 %v607, %v603
    %v692 = vpack.c.b16 %v608, %v604
    %v693 = vpack.c.b16 %v613, %v609
    %v694 = vpack.c.b16 %v614, %v610
    %v695 = vpack.c.b16 %v615, %v611
    %v696 = vpack.c.b16 %v616, %v612
    %v697 = vpack.c.b16 %v621, %v617
    %v698 = vpack.c.b16 %v622, %v618
    %v699 = vpack.c.b16 %v623, %v619
    %v700 = vpack.c.b16 %v624, %v620
    %v701 = vpack.c.b16 %v629, %v625
    %v702 = vpack.c.b16 %v630, %v626
    %v703 = vpack.c.b16 %v631, %v627
    %v704 = vpack.c.b16 %v632, %v628
    %v705 = vpack.c.b16 %v637, %v633
    %v706 = vpack.c.b16 %v638, %v634
    %v707 = vpack.c.b16 %v639, %v635
    %v708 = vpack.c.b16 %v640, %v636
    %v709 = vpack.c.b16 %v645, %v641
    %v710 = vpack.c.b16 %v646, %v642
    %v711 = vpack.c.b16 %v647, %v643
    %v712 = vpack.c.b16 %v648, %v644
    %v713 = vpack.c.b16 %v653, %v649
    %v714 = vpack.c.b16 %v654, %v650
    %v715 = vpack.c.b16 %v655, %v651
    %v716 = vpack.c.b16 %v656, %v652
    %v717 = vpack.c.b16 %v661, %v657
    %v718 = vpack.c.b16 %v662, %v658
    %v719 = vpack.c.b16 %v663, %v659
    %v720 = vpack.c.b16 %v664, %v660
    %v721 = vpack.c.b16 %v665, %v665
    %v722 = vpack.c.b16 %v666, %v666
    %v723 = vpack.c.b16 %v667, %v667
    %v724 = vpack.c.b16 %v668, %v668
    %vm777 = vcmask 719872
    %v779 = vsel %vm777, %v505, 0
    %v782 = vsel %vm110, %v721, 0
    %v785 = vsel %vm110, %v722, 0
    %v788 = vsel %vm110, %v723, 0
    %v791 = vsel %vm110, %v724, 0
    %793 = vmatprep.subr.bf16.mxu0 %v670
    %794 = vmatpush1.bf16.msra.mxu0 %v669
    %795 = vmatprep.subr.bf16.mxu0 %v674
    %796 = vmatpush1.bf16.msra.mxu0 %v673
    %797 = vmatprep.subr.bf16.mxu0 %v678
    %798 = vmatpush1.bf16.msra.mxu0 %v677
    %799 = vmatprep.subr.bf16.mxu0 %v682
    %800 = vmatpush1.bf16.msra.mxu0 %v681
    %801 = vmatprep.subr.bf16.mxu0 %v686
    %802 = vmatpush1.bf16.msra.mxu0 %v685
    %803 = vmatprep.subr.bf16.mxu0 %v690
    %804 = vmatpush1.bf16.msra.mxu0 %v689
    %805 = vmatprep.subr.bf16.mxu0 %v694
    %806 = vmatpush1.bf16.msra.mxu0 %v693
    %807 = vmatprep.subr.bf16.mxu0 %v698
    %808 = vmatpush1.bf16.msra.mxu0 %v697
    %809 = vmatprep.subr.bf16.mxu0 %v702
    %810 = vmatpush1.bf16.msra.mxu0 %v701
    %811 = vmatprep.subr.bf16.mxu0 %v706
    %812 = vmatpush1.bf16.msra.mxu0 %v705
    %813 = vmatprep.subr.bf16.mxu0 %v710
    %814 = vmatpush1.bf16.msra.mxu0 %v709
    %815 = vmatprep.subr.bf16.mxu0 %v714
    %816 = vmatpush1.bf16.msra.mxu0 %v713
    %817 = vmatprep.subr.bf16.mxu0 %v718
    %818 = vmatpush1.bf16.msra.mxu0 %v717
    %819 = vmatprep.subr.bf16.mxu0 %v785
    %820 = vmatpush1.bf16.msra.mxu0 %v782
    %821 = vmatprep.subr.bf16.mxu0 0
    %822 = vmatpush1.bf16.msra.mxu0 0
    %823 = vmatprep.subr.bf16.mxu0 0
    %824 = vmatpush1.bf16.msra.mxu0 0
    %825 = vmatprep.mubr.bf16.mxu0 %v779
    %826 = vmatmul.mubr.bf16.gmra.mrb[0].mxu0 %v504
    %v827 = vpop.f32.mrb[0].mxu0
    %v828 = vadd.f32 %v454, %v827
    %v829 = vpop.f32.mrb[0].mxu0
    %v830 = vadd.f32 %v456, %v829
    %v831 = vpop.f32.mrb[0].mxu0
    %v832 = vpop.f32.mrb[0].mxu0
    %833 = vdwg.mxu0
    %834 = vmatprep.subr.bf16.mxu0 %v672
    %835 = vmatpush1.bf16.msra.mxu0 %v671
    %836 = vmatprep.subr.bf16.mxu0 %v676
    %837 = vmatpush1.bf16.msra.mxu0 %v675
    %838 = vmatprep.subr.bf16.mxu0 %v680
    %839 = vmatpush1.bf16.msra.mxu0 %v679
    %840 = vmatprep.subr.bf16.mxu0 %v684
    %841 = vmatpush1.bf16.msra.mxu0 %v683
    %842 = vmatprep.subr.bf16.mxu0 %v688
    %843 = vmatpush1.bf16.msra.mxu0 %v687
    %844 = vmatprep.subr.bf16.mxu0 %v692
    %845 = vmatpush1.bf16.msra.mxu0 %v691
    %846 = vmatprep.subr.bf16.mxu0 %v696
    %847 = vmatpush1.bf16.msra.mxu0 %v695
    %848 = vmatprep.subr.bf16.mxu0 %v700
    %849 = vmatpush1.bf16.msra.mxu0 %v699
    %850 = vmatprep.subr.bf16.mxu0 %v704
    %851 = vmatpush1.bf16.msra.mxu0 %v703
    %852 = vmatprep.subr.bf16.mxu0 %v708
    %853 = vmatpush1.bf16.msra.mxu0 %v707
    %854 = vmatprep.subr.bf16.mxu0 %v712
    %855 = vmatpush1.bf16.msra.mxu0 %v711
    %856 = vmatprep.subr.bf16.mxu0 %v716
    %857 = vmatpush1.bf16.msra.mxu0 %v715
    %858 = vmatprep.subr.bf16.mxu0 %v720
    %859 = vmatpush1.bf16.msra.mxu0 %v719
    %860 = vmatprep.subr.bf16.mxu0 %v791
    %861 = vmatpush1.bf16.msra.mxu0 %v788
    %862 = vmatprep.subr.bf16.mxu0 0
    %863 = vmatpush1.bf16.msra.mxu0 0
    %864 = vmatprep.subr.bf16.mxu0 0
    %865 = vmatpush1.bf16.msra.mxu0 0
    %866 = vmatprep.mubr.bf16.mxu0 %v779
    %867 = vmatmul.mubr.bf16.gmra.mrb[0].mxu0 %v504
    %v868 = vpop.f32.mrb[0].mxu0
    %v869 = vadd.f32 %v495, %v868
    %v870 = vpop.f32.mrb[0].mxu0
    %v871 = vadd.f32 %v497, %v870
    %v872 = vpop.f32.mrb[0].mxu0
    %v873 = vpop.f32.mrb[0].mxu0
    %874 = vdwg.mxu0
    %v875 = vpack.c.bf16 %v244, %v244
    %v876 = vld [vmem:[#allocation6] sm:$0xff]
    %v877 = vld [vmem:[#allocation6 + $0x8] sm:$0xff]
    %v878 = vld [vmem:[#allocation6 + $0x10] sm:$0xff]
    %v879 = vld [vmem:[#allocation6 + $0x18] sm:$0xff]
    %v880 = vld [vmem:[#allocation6 + $0x20] sm:$0xff]
    %v881 = vld [vmem:[#allocation6 + $0x28] sm:$0xff]
    %v888 = vunpack.c.l.b16 %v876
    %v889 = vunpack.c.h.b16 %v876
    %v890 = vunpack.c.l.b16 %v877
    %v891 = vunpack.c.h.b16 %v877
    %v892 = vunpack.c.l.b16 %v878
    %v893 = vunpack.c.h.b16 %v878
    %v894 = vunpack.c.l.b16 %v879
    %v895 = vunpack.c.h.b16 %v879
    %v896 = vunpack.c.l.b16 %v880
    %v897 = vunpack.c.h.b16 %v880
    %v898 = vunpack.c.l.b16 %v881
    %v899 = vunpack.c.h.b16 %v881
    %v900 = vpack.c.b16 %v892, %v888
    %v901 = vpack.c.b16 %v893, %v889
    %v902 = vpack.c.b16 %v894, %v890
    %v903 = vpack.c.b16 %v895, %v891
    %v904 = vpack.c.b16 %v896, %v896
    %v905 = vpack.c.b16 %v897, %v897
    %v906 = vpack.c.b16 %v898, %v898
    %v907 = vpack.c.b16 %v899, %v899
    %vm912 = vcmask 195584
    %v914 = vsel %vm912, %v875, 0
    %v917 = vsel %vm110, %v904, 0
    %v920 = vsel %vm110, %v905, 0
    %v923 = vsel %vm110, %v906, 0
    %v926 = vsel %vm110, %v907, 0
    %928 = vmatprep.subr.bf16.mxu0 %v901
    %929 = vmatpush1.bf16.msra.mxu0 %v900
    %930 = vmatprep.subr.bf16.mxu0 %v920
    %931 = vmatpush1.bf16.msra.mxu0 %v917
    %932 = vmatprep.subr.bf16.mxu0 0
    %933 = vmatpush1.bf16.msra.mxu0 0
    %934 = vmatprep.subr.bf16.mxu0 0
    %935 = vmatpush1.bf16.msra.mxu0 0
    %936 = vmatprep.subr.bf16.mxu0 0
    %937 = vmatpush1.bf16.msra.mxu0 0
    %938 = vmatprep.subr.bf16.mxu0 0
    %939 = vmatpush1.bf16.msra.mxu0 0
    %940 = vmatprep.subr.bf16.mxu0 0
    %941 = vmatpush1.bf16.msra.mxu0 0
    %942 = vmatprep.subr.bf16.mxu0 0
    %943 = vmatpush1.bf16.msra.mxu0 0
    %944 = vmatprep.subr.bf16.mxu0 0
    %945 = vmatpush1.bf16.msra.mxu0 0
    %946 = vmatprep.subr.bf16.mxu0 0
    %947 = vmatpush1.bf16.msra.mxu0 0
    %948 = vmatprep.subr.bf16.mxu0 0
    %949 = vmatpush1.bf16.msra.mxu0 0
    %950 = vmatprep.subr.bf16.mxu0 0
    %951 = vmatpush1.bf16.msra.mxu0 0
    %952 = vmatprep.subr.bf16.mxu0 0
    %953 = vmatpush1.bf16.msra.mxu0 0
    %954 = vmatprep.subr.bf16.mxu0 0
    %955 = vmatpush1.bf16.msra.mxu0 0
    %956 = vmatprep.subr.bf16.mxu0 0
    %957 = vmatpush1.bf16.msra.mxu0 0
    %958 = vmatprep.subr.bf16.mxu0 0
    %959 = vmatpush1.bf16.msra.mxu0 0
    %960 = vmatprep.mubr.bf16.mxu0 0
    %961 = vmatmul.mubr.bf16.gmra.mrb[0].mxu0 %v914
    %v962 = vpop.f32.mrb[0].mxu0
    %v963 = vadd.f32 0.0, %v962
    %v964 = vpop.f32.mrb[0].mxu0
    %v965 = vadd.f32 0.0, %v964
    %v966 = vpop.f32.mrb[0].mxu0
    %v967 = vpop.f32.mrb[0].mxu0
    %968 = vdwg.mxu0
    %969 = vmatprep.subr.bf16.mxu0 %v903
    %970 = vmatpush1.bf16.msra.mxu0 %v902
    %971 = vmatprep.subr.bf16.mxu0 %v926
    %972 = vmatpush1.bf16.msra.mxu0 %v923
    %973 = vmatprep.subr.bf16.mxu0 0
    %974 = vmatpush1.bf16.msra.mxu0 0
    %975 = vmatprep.subr.bf16.mxu0 0
    %976 = vmatpush1.bf16.msra.mxu0 0
    %977 = vmatprep.subr.bf16.mxu0 0
    %978 = vmatpush1.bf16.msra.mxu0 0
    %979 = vmatprep.subr.bf16.mxu0 0
    %980 = vmatpush1.bf16.msra.mxu0 0
    %981 = vmatprep.subr.bf16.mxu0 0
    %982 = vmatpush1.bf16.msra.mxu0 0
    %983 = vmatprep.subr.bf16.mxu0 0
    %984 = vmatpush1.bf16.msra.mxu0 0
    %985 = vmatprep.subr.bf16.mxu0 0
    %986 = vmatpush1.bf16.msra.mxu0 0
    %987 = vmatprep.subr.bf16.mxu0 0
    %988 = vmatpush1.bf16.msra.mxu0 0
    %989 = vmatprep.subr.bf16.mxu0 0
    %990 = vmatpush1.bf16.msra.mxu0 0
    %991 = vmatprep.subr.bf16.mxu0 0
    %992 = vmatpush1.bf16.msra.mxu0 0
    %993 = vmatprep.subr.bf16.mxu0 0
    %994 = vmatpush1.bf16.msra.mxu0 0
    %995 = vmatprep.subr.bf16.mxu0 0
    %996 = vmatpush1.bf16.msra.mxu0 0
    %997 = vmatprep.subr.bf16.mxu0 0
    %998 = vmatpush1.bf16.msra.mxu0 0
    %999 = vmatprep.subr.bf16.mxu0 0
    %1000 = vmatpush1.bf16.msra.mxu0 0
    %1001 = vmatprep.mubr.bf16.mxu0 0
    %1002 = vmatmul.mubr.bf16.gmra.mrb[0].mxu0 %v914
    %v1003 = vpop.f32.mrb[0].mxu0
    %v1004 = vadd.f32 0.0, %v1003
    %v1005 = vpop.f32.mrb[0].mxu0
    %v1006 = vadd.f32 0.0, %v1005
    %v1007 = vpop.f32.mrb[0].mxu0
    %v1008 = vpop.f32.mrb[0].mxu0
    %1009 = vdwg.mxu0
    %v1010 = vadd.f32 %v828, %v963
    %v1011 = vadd.f32 %v830, %v965
    %v1012 = vadd.f32 %v869, %v1004
    %v1013 = vadd.f32 %v871, %v1006
    %v1014 = vld [vmem:[%s7] sm:$0xf]
    %v1016 = vlaneseq
    %v1017 = vshrl.u32 %v1016, 7
    %v1018 = vsub.s32 0, %v1017
    %v1019 = vrot.slane %v1014, %v1018
    %v1020 = vlaneseq
    %v1021 = vshrl.u32 %v1020, 7
    %v1022 = vsub.s32 1, %v1021
    %v1023 = vrot.slane %v1014, %v1022
    %v1024 = vlaneseq
    %v1025 = vshrl.u32 %v1024, 7
    %v1026 = vsub.s32 2, %v1025
    %v1027 = vrot.slane %v1014, %v1026
    %v1028 = vlaneseq
    %v1029 = vshrl.u32 %v1028, 7
    %v1030 = vsub.s32 3, %v1029
    %v1031 = vrot.slane %v1014, %v1030
    %v1036 = vadd.f32 %v1010, %v1019
    %v1037 = vadd.f32 %v1011, %v1023
    %v1038 = vadd.f32 %v1012, %v1027
    %v1039 = vadd.f32 %v1013, %v1031
    %1040 = vst [vmem:[#allocation2] sm:$0xff] %v1036
    %1041 = vst [vmem:[#allocation2 + $0x8] sm:$0xff] %v1037
    %1042 = vst [vmem:[#allocation2 + $0x10] sm:$0xff] %v1038
    %1043 = vst.msk [vmem:[#allocation2 + $0x18] sm:$0xff] %vm106, %v1039
    %v1044 = vld [vmem:[#allocation2] sm:$0xff]
    %v1045 = vmax.f32 %v1044, 0.0
    %vm1046 = vcmask 154624
    %1047 = vst.msk [vmem:[#allocation2] sm:$0xff] %vm1046, %v1045
    %v1048 = vpack.c.bf16 %v1045, %v1045
    %v1051 = vsel %vm1046, %v1048, 0
    %v1053 = vld [vmem:[#allocation2] sm:$0xff]
    %v1054 = vld [vmem:[%s8] sm:$0xf]
    %v1055 = vld [vmem:[%s8 + $0x4] sm:$0xf]
    %v1056 = vld [vmem:[%s8 + $0x8] sm:$0xf]
    %v1057 = vld [vmem:[%s8 + $0xc] sm:$0xf]
    %v1058 = vld [vmem:[%s8 + $0x10] sm:$0xf]
    %v1059 = vld [vmem:[%s8 + $0x14] sm:$0xf]
    %v1060 = vld [vmem:[%s8 + $0x18] sm:$0xf]
    %v1061 = vld [vmem:[%s8 + $0x1c] sm:$0xf]
    %v1062 = vld [vmem:[%s8 + $0x20] sm:$0xf]
    %v1063 = vld [vmem:[%s8 + $0x24] sm:$0xf]
    %v1064 = vld [vmem:[%s8 + $0x28] sm:$0xf]
    %v1065 = vld [vmem:[%s8 + $0x2c] sm:$0xf]
    %v1066 = vld [vmem:[%s8 + $0x30] sm:$0xf]
    %v1067 = vld [vmem:[%s8 + $0x34] sm:$0xf]
    %v1068 = vld [vmem:[%s8 + $0x38] sm:$0xf]
    %v1069 = vld [vmem:[%s8 + $0x3c] sm:$0xf]
    %v1086 = vunpack.c.l.b16 %v1054
    %v1087 = vunpack.c.l.b16 %v1055
    %v1088 = vunpack.c.l.b16 %v1056
    %v1089 = vunpack.c.l.b16 %v1057
    %v1090 = vunpack.c.l.b16 %v1058
    %v1091 = vunpack.c.l.b16 %v1059
    %v1092 = vunpack.c.l.b16 %v1060
    %v1093 = vunpack.c.l.b16 %v1061
    %v1094 = vunpack.c.l.b16 %v1062
    %v1095 = vunpack.c.l.b16 %v1063
    %v1096 = vunpack.c.l.b16 %v1064
    %v1097 = vunpack.c.l.b16 %v1065
    %v1098 = vunpack.c.l.b16 %v1066
    %v1099 = vunpack.c.l.b16 %v1067
    %v1100 = vunpack.c.l.b16 %v1068
    %v1101 = vunpack.c.l.b16 %v1069
    %v1102 = vpack.c.b16 %v1087, %v1086
    %v1103 = vpack.c.b16 %v1089, %v1088
    %v1104 = vpack.c.b16 %v1091, %v1090
    %v1105 = vpack.c.b16 %v1093, %v1092
    %v1106 = vpack.c.b16 %v1095, %v1094
    %v1107 = vpack.c.b16 %v1097, %v1096
    %v1108 = vpack.c.b16 %v1099, %v1098
    %v1109 = vpack.c.b16 %v1101, %v1100
    %1118 = vmatprep.subr.bf16.mxu0 0
    %1119 = vmatpush1.bf16.msra.mxu0 %v1102
    %1120 = vmatprep.subr.bf16.mxu0 0
    %1121 = vmatpush1.bf16.msra.mxu0 %v1103
    %1122 = vmatprep.subr.bf16.mxu0 0
    %1123 = vmatpush1.bf16.msra.mxu0 %v1104
    %1124 = vmatprep.subr.bf16.mxu0 0
    %1125 = vmatpush1.bf16.msra.mxu0 %v1105
    %1126 = vmatprep.subr.bf16.mxu0 0
    %1127 = vmatpush1.bf16.msra.mxu0 %v1106
    %1128 = vmatprep.subr.bf16.mxu0 0
    %1129 = vmatpush1.bf16.msra.mxu0 %v1107
    %1130 = vmatprep.subr.bf16.mxu0 0
    %1131 = vmatpush1.bf16.msra.mxu0 %v1108
    %1132 = vmatprep.subr.bf16.mxu0 0
    %1133 = vmatpush1.bf16.msra.mxu0 %v1109
    %1134 = vmatprep.subr.bf16.mxu0 0
    %1135 = vmatpush1.bf16.msra.mxu0 0
    %1136 = vmatprep.subr.bf16.mxu0 0
    %1137 = vmatpush1.bf16.msra.mxu0 0
    %1138 = vmatprep.subr.bf16.mxu0 0
    %1139 = vmatpush1.bf16.msra.mxu0 0
    %1140 = vmatprep.subr.bf16.mxu0 0
    %1141 = vmatpush1.bf16.msra.mxu0 0
    %1142 = vmatprep.subr.bf16.mxu0 0
    %1143 = vmatpush1.bf16.msra.mxu0 0
    %1144 = vmatprep.subr.bf16.mxu0 0
    %1145 = vmatpush1.bf16.msra.mxu0 0
    %1146 = vmatprep.subr.bf16.mxu0 0
    %1147 = vmatpush1.bf16.msra.mxu0 0
    %1148 = vmatprep.subr.bf16.mxu0 0
    %1149 = vmatpush1.bf16.msra.mxu0 0
    %1150 = vmatprep.mubr.bf16.mxu0 0
    %1151 = vmatmul.mubr.bf16.gmra.mrb[0].mxu0 %v1051
    %v1152 = vpop.f32.mrb[0].mxu0
    %v1153 = vadd.f32 0.0, %v1152
    %v1154 = vpop.f32.mrb[0].mxu0
    %v1155 = vpop.f32.mrb[0].mxu0
    %v1156 = vpop.f32.mrb[0].mxu0
    %1157 = vdwg.mxu0
    %1159 = vrot.lane.b32.xlu0 %v1153, 19
    %v1160 = vpop.permute.xlu0 %1159
    %v1162 = vadd.f32 %v1053, %v1160
    %v1163 = vmax.f32 %v1162, 0.0
    %vm1164 = vcmask 621720
    %1165 = vst.msk [vmem:[#allocation2] sm:$0xff] %vm1164, %v1163
    %v1166 = vpack.c.bf16 %v1163, %v1163
    %1168 = vrot.lane.b32.xlu0 %v1166, 109
    %v1169 = vpop.permute.xlu0 %1168
    %vm1170 = vcmask 465920
    %v1172 = vsel %vm1170, %v1169, 0
    %v1174 = vld [vmem:[#allocation2] sm:$0xff]
    %v1175 = vld [vmem:[#allocation2 + $0x8] sm:$0xff]
    %s1176 = scalar_lea.vmem %s8, 64
    %v1177 = vld [vmem:[%s1176] sm:$0xf]
    %v1178 = vld [vmem:[%s1176 + $0x4] sm:$0xf]
    %v1179 = vld [vmem:[%s1176 + $0x8] sm:$0xf]
    %v1180 = vld [vmem:[%s1176 + $0xc] sm:$0xf]
    %v1181 = vld [vmem:[%s1176 + $0x10] sm:$0xf]
    %v1182 = vld [vmem:[%s1176 + $0x14] sm:$0xf]
    %v1183 = vld [vmem:[%s1176 + $0x18] sm:$0xf]
    %v1184 = vld [vmem:[%s1176 + $0x1c] sm:$0xf]
    %v1185 = vld [vmem:[%s1176 + $0x20] sm:$0xf]
    %v1186 = vld [vmem:[%s1176 + $0x24] sm:$0xf]
    %v1187 = vld [vmem:[%s1176 + $0x28] sm:$0xf]
    %v1188 = vld [vmem:[%s1176 + $0x2c] sm:$0xf]
    %v1189 = vld [vmem:[%s1176 + $0x30] sm:$0xf]
    %v1190 = vld [vmem:[%s1176 + $0x34] sm:$0xf]
    %v1191 = vld [vmem:[%s1176 + $0x38] sm:$0xf]
    %v1192 = vld [vmem:[%s1176 + $0x3c] sm:$0xf]
    %v1209 = vunpack.c.l.b16 %v1177
    %v1210 = vunpack.c.l.b16 %v1178
    %v1211 = vunpack.c.l.b16 %v1179
    %v1212 = vunpack.c.l.b16 %v1180
    %v1213 = vunpack.c.l.b16 %v1181
    %v1214 = vunpack.c.l.b16 %v1182
    %v1215 = vunpack.c.l.b16 %v1183
    %v1216 = vunpack.c.l.b16 %v1184
    %v1217 = vunpack.c.l.b16 %v1185
    %v1218 = vunpack.c.l.b16 %v1186
    %v1219 = vunpack.c.l.b16 %v1187
    %v1220 = vunpack.c.l.b16 %v1188
    %v1221 = vunpack.c.l.b16 %v1189
    %v1222 = vunpack.c.l.b16 %v1190
    %v1223 = vunpack.c.l.b16 %v1191
    %v1224 = vunpack.c.l.b16 %v1192
    %v1225 = vpack.c.b16 %v1210, %v1209
    %v1226 = vpack.c.b16 %v1212, %v1211
    %v1227 = vpack.c.b16 %v1214, %v1213
    %v1228 = vpack.c.b16 %v1216, %v1215
    %v1229 = vpack.c.b16 %v1218, %v1217
    %v1230 = vpack.c.b16 %v1220, %v1219
    %v1231 = vpack.c.b16 %v1222, %v1221
    %v1232 = vpack.c.b16 %v1224, %v1223
    %1241 = vmatprep.subr.bf16.mxu0 0
    %1242 = vmatpush1.bf16.msra.mxu0 %v1225
    %1243 = vmatprep.subr.bf16.mxu0 0
    %1244 = vmatpush1.bf16.msra.mxu0 %v1226
    %1245 = vmatprep.subr.bf16.mxu0 0
    %1246 = vmatpush1.bf16.msra.mxu0 %v1227
    %1247 = vmatprep.subr.bf16.mxu0 0
    %1248 = vmatpush1.bf16.msra.mxu0 %v1228
    %1249 = vmatprep.subr.bf16.mxu0 0
    %1250 = vmatpush1.bf16.msra.mxu0 %v1229
    %1251 = vmatprep.subr.bf16.mxu0 0
    %1252 = vmatpush1.bf16.msra.mxu0 %v1230
    %1253 = vmatprep.subr.bf16.mxu0 0
    %1254 = vmatpush1.bf16.msra.mxu0 %v1231
    %1255 = vmatprep.subr.bf16.mxu0 0
    %1256 = vmatpush1.bf16.msra.mxu0 %v1232
    %1257 = vmatprep.subr.bf16.mxu0 0
    %1258 = vmatpush1.bf16.msra.mxu0 0
    %1259 = vmatprep.subr.bf16.mxu0 0
    %1260 = vmatpush1.bf16.msra.mxu0 0
    %1261 = vmatprep.subr.bf16.mxu0 0
    %1262 = vmatpush1.bf16.msra.mxu0 0
    %1263 = vmatprep.subr.bf16.mxu0 0
    %1264 = vmatpush1.bf16.msra.mxu0 0
    %1265 = vmatprep.subr.bf16.mxu0 0
    %1266 = vmatpush1.bf16.msra.mxu0 0
    %1267 = vmatprep.subr.bf16.mxu0 0
    %1268 = vmatpush1.bf16.msra.mxu0 0
    %1269 = vmatprep.subr.bf16.mxu0 0
    %1270 = vmatpush1.bf16.msra.mxu0 0
    %1271 = vmatprep.subr.bf16.mxu0 0
    %1272 = vmatpush1.bf16.msra.mxu0 0
    %1273 = vmatprep.mubr.bf16.mxu0 0
    %1274 = vmatmul.mubr.bf16.gmra.mrb[0].mxu0 %v1172
    %v1275 = vpop.f32.mrb[0].mxu0
    %v1276 = vadd.f32 0.0, %v1275
    %v1277 = vpop.f32.mrb[0].mxu0
    %v1278 = vpop.f32.mrb[0].mxu0
    %v1279 = vpop.f32.mrb[0].mxu0
    %1280 = vdwg.mxu0
    %1282 = vrot.lane.b32.xlu0 %v1276, 76
    %v1283 = vpop.permute.xlu0 %1282
    %v1285 = vadd.f32 %v1174, %v1283
    %v1286 = vadd.f32 %v1175, %v1283
    %v1287 = vmax.f32 %v1285, 0.0
    %v1288 = vmax.f32 %v1286, 0.0
    %vm1289 = vcmask 1048160
    %1290 = vst.msk [vmem:[#allocation2] sm:$0xff] %vm1289, %v1287
    %vm1291 = vcmask 39936
    %1292 = vst.msk [vmem:[#allocation2 + $0x8] sm:$0xff] %vm1291, %v1288
    %v1293 = vpack.c.bf16 %v1287, %v1287
    %v1294 = vpack.c.bf16 %v1288, %v1288
    %1297 = vrot.lane.b32.xlu0 %v1293, 52
    %v1298 = vpop.permute.xlu0 %1297
    %1299 = vrot.lane.b32.xlu0 %v1294, 52
    %v1300 = vpop.permute.xlu0 %1299
    %vm1301 = vcmask 424960
    %v1302 = vsel %vm1301, %v1298, %v1300
    %v1304 = vsel %vm1170, %v1302, 0
    %v1306 = vld [vmem:[#allocation2 + $0x8] sm:$0xff]
    %s1307 = scalar_lea.vmem %s8, 128
    %v1308 = vld [vmem:[%s1307] sm:$0xf]
    %v1309 = vld [vmem:[%s1307 + $0x4] sm:$0xf]
    %v1310 = vld [vmem:[%s1307 + $0x8] sm:$0xf]
    %v1311 = vld [vmem:[%s1307 + $0xc] sm:$0xf]
    %v1312 = vld [vmem:[%s1307 + $0x10] sm:$0xf]
    %v1313 = vld [vmem:[%s1307 + $0x14] sm:$0xf]
    %v1314 = vld [vmem:[%s1307 + $0x18] sm:$0xf]
    %v1315 = vld [vmem:[%s1307 + $0x1c] sm:$0xf]
    %v1316 = vld [vmem:[%s1307 + $0x20] sm:$0xf]
    %v1317 = vld [vmem:[%s1307 + $0x24] sm:$0xf]
    %v1318 = vld [vmem:[%s1307 + $0x28] sm:$0xf]
    %v1319 = vld [vmem:[%s1307 + $0x2c] sm:$0xf]
    %v1320 = vld [vmem:[%s1307 + $0x30] sm:$0xf]
    %v1321 = vld [vmem:[%s1307 + $0x34] sm:$0xf]
    %v1322 = vld [vmem:[%s1307 + $0x38] sm:$0xf]
    %v1323 = vld [vmem:[%s1307 + $0x3c] sm:$0xf]
    %v1340 = vunpack.c.l.b16 %v1308
    %v1341 = vunpack.c.l.b16 %v1309
    %v1342 = vunpack.c.l.b16 %v1310
    %v1343 = vunpack.c.l.b16 %v1311
    %v1344 = vunpack.c.l.b16 %v1312
    %v1345 = vunpack.c.l.b16 %v1313
    %v1346 = vunpack.c.l.b16 %v1314
    %v1347 = vunpack.c.l.b16 %v1315
    %v1348 = vunpack.c.l.b16 %v1316
    %v1349 = vunpack.c.l.b16 %v1317
    %v1350 = vunpack.c.l.b16 %v1318
    %v1351 = vunpack.c.l.b16 %v1319
    %v1352 = vunpack.c.l.b16 %v1320
    %v1353 = vunpack.c.l.b16 %v1321
    %v1354 = vunpack.c.l.b16 %v1322
    %v1355 = vunpack.c.l.b16 %v1323
    %v1356 = vpack.c.b16 %v1341, %v1340
    %v1357 = vpack.c.b16 %v1343, %v1342
    %v1358 = vpack.c.b16 %v1345, %v1344
    %v1359 = vpack.c.b16 %v1347, %v1346
    %v1360 = vpack.c.b16 %v1349, %v1348
    %v1361 = vpack.c.b16 %v1351, %v1350
    %v1362 = vpack.c.b16 %v1353, %v1352
    %v1363 = vpack.c.b16 %v1355, %v1354
    %1372 = vmatprep.subr.bf16.mxu0 0
    %1373 = vmatpush1.bf16.msra.mxu0 %v1356
    %1374 = vmatprep.subr.bf16.mxu0 0
    %1375 = vmatpush1.bf16.msra.mxu0 %v1357
    %1376 = vmatprep.subr.bf16.mxu0 0
    %1377 = vmatpush1.bf16.msra.mxu0 %v1358
    %1378 = vmatprep.subr.bf16.mxu0 0
    %1379 = vmatpush1.bf16.msra.mxu0 %v1359
    %1380 = vmatprep.subr.bf16.mxu0 0
    %1381 = vmatpush1.bf16.msra.mxu0 %v1360
    %1382 = vmatprep.subr.bf16.mxu0 0
    %1383 = vmatpush1.bf16.msra.mxu0 %v1361
    %1384 = vmatprep.subr.bf16.mxu0 0
    %1385 = vmatpush1.bf16.msra.mxu0 %v1362
    %1386 = vmatprep.subr.bf16.mxu0 0
    %1387 = vmatpush1.bf16.msra.mxu0 %v1363
    %1388 = vmatprep.subr.bf16.mxu0 0
    %1389 = vmatpush1.bf16.msra.mxu0 0
    %1390 = vmatprep.subr.bf16.mxu0 0
    %1391 = vmatpush1.bf16.msra.mxu0 0
    %1392 = vmatprep.subr.bf16.mxu0 0
    %1393 = vmatpush1.bf16.msra.mxu0 0
    %1394 = vmatprep.subr.bf16.mxu0 0
    %1395 = vmatpush1.bf16.msra.mxu0 0
    %1396 = vmatprep.subr.bf16.mxu0 0
    %1397 = vmatpush1.bf16.msra.mxu0 0
    %1398 = vmatprep.subr.bf16.mxu0 0
    %1399 = vmatpush1.bf16.msra.mxu0 0
    %1400 = vmatprep.subr.bf16.mxu0 0
    %1401 = vmatpush1.bf16.msra.mxu0 0
    %1402 = vmatprep.subr.bf16.mxu0 0
    %1403 = vmatpush1.bf16.msra.mxu0 0
    %1404 = vmatprep.mubr.bf16.mxu0 0
    %1405 = vmatmul.mubr.bf16.gmra.mrb[0].mxu0 %v1304
    %v1406 = vpop.f32.mrb[0].mxu0
    %v1407 = vadd.f32 0.0, %v1406
    %v1408 = vpop.f32.mrb[0].mxu0
    %v1409 = vpop.f32.mrb[0].mxu0
    %v1410 = vpop.f32.mrb[0].mxu0
    %1411 = vdwg.mxu0
    %1413 = vrot.lane.b32.xlu0 %v1407, 5
    %v1414 = vpop.permute.xlu0 %1413
    %v1416 = vadd.f32 %v1306, %v1414
    %v1417 = vmax.f32 %v1416, 0.0
    %vm1418 = vcmask 506920
    %1419 = vst.msk [vmem:[#allocation2 + $0x8] sm:$0xff] %vm1418, %v1417
    %v1420 = vpack.c.bf16 %v1417, %v1417
    %1422 = vrot.lane.b32.xlu0 %v1420, 123
    %v1423 = vpop.permute.xlu0 %1422
    %v1425 = vsel %vm1170, %v1423, 0
    %v1427 = vld [vmem:[#allocation2 + $0x8] sm:$0xff]
    %v1428 = vld [vmem:[#allocation2 + $0x10] sm:$0xff]
    %s1429 = scalar_lea.vmem %s8, 192
    %v1430 = vld [vmem:[%s1429] sm:$0xf]
    %v1431 = vld [vmem:[%s1429 + $0x4] sm:$0xf]
    %v1432 = vld [vmem:[%s1429 + $0x8] sm:$0xf]
    %v1433 = vld [vmem:[%s1429 + $0xc] sm:$0xf]
    %v1434 = vld [vmem:[%s1429 + $0x10] sm:$0xf]
    %v1435 = vld [vmem:[%s1429 + $0x14] sm:$0xf]
    %v1436 = vld [vmem:[%s1429 + $0x18] sm:$0xf]
    %v1437 = vld [vmem:[%s1429 + $0x1c] sm:$0xf]
    %v1438 = vld [vmem:[%s1429 + $0x20] sm:$0xf]
    %v1439 = vld [vmem:[%s1429 + $0x24] sm:$0xf]
    %v1440 = vld [vmem:[%s1429 + $0x28] sm:$0xf]
    %v1441 = vld [vmem:[%s1429 + $0x2c] sm:$0xf]
    %v1442 = vld [vmem:[%s1429 + $0x30] sm:$0xf]
    %v1443 = vld [vmem:[%s1429 + $0x34] sm:$0xf]
    %v1444 = vld [vmem:[%s1429 + $0x38] sm:$0xf]
    %v1445 = vld [vmem:[%s1429 + $0x3c] sm:$0xf]
    %v1462 = vunpack.c.l.b16 %v1430
    %v1463 = vunpack.c.l.b16 %v1431
    %v1464 = vunpack.c.l.b16 %v1432
    %v1465 = vunpack.c.l.b16 %v1433
    %v1466 = vunpack.c.l.b16 %v1434
    %v1467 = vunpack.c.l.b16 %v1435
    %v1468 = vunpack.c.l.b16 %v1436
    %v1469 = vunpack.c.l.b16 %v1437
    %v1470 = vunpack.c.l.b16 %v1438
    %v1471 = vunpack.c.l.b16 %v1439
    %v1472 = vunpack.c.l.b16 %v1440
    %v1473 = vunpack.c.l.b16 %v1441
    %v1474 = vunpack.c.l.b16 %v1442
    %v1475 = vunpack.c.l.b16 %v1443
    %v1476 = vunpack.c.l.b16 %v1444
    %v1477 = vunpack.c.l.b16 %v1445
    %v1478 = vpack.c.b16 %v1463, %v1462
    %v1479 = vpack.c.b16 %v1465, %v1464
    %v1480 = vpack.c.b16 %v1467, %v1466
    %v1481 = vpack.c.b16 %v1469, %v1468
    %v1482 = vpack.c.b16 %v1471, %v1470
    %v1483 = vpack.c.b16 %v1473, %v1472
    %v1484 = vpack.c.b16 %v1475, %v1474
    %v1485 = vpack.c.b16 %v1477, %v1476
    %1494 = vmatprep.subr.bf16.mxu0 0
    %1495 = vmatpush1.bf16.msra.mxu0 %v1478
    %1496 = vmatprep.subr.bf16.mxu0 0
    %1497 = vmatpush1.bf16.msra.mxu0 %v1479
    %1498 = vmatprep.subr.bf16.mxu0 0
    %1499 = vmatpush1.bf16.msra.mxu0 %v1480
    %1500 = vmatprep.subr.bf16.mxu0 0
    %1501 = vmatpush1.bf16.msra.mxu0 %v1481
    %1502 = vmatprep.subr.bf16.mxu0 0
    %1503 = vmatpush1.bf16.msra.mxu0 %v1482
    %1504 = vmatprep.subr.bf16.mxu0 0
    %1505 = vmatpush1.bf16.msra.mxu0 %v1483
    %1506 = vmatprep.subr.bf16.mxu0 0
    %1507 = vmatpush1.bf16.msra.mxu0 %v1484
    %1508 = vmatprep.subr.bf16.mxu0 0
    %1509 = vmatpush1.bf16.msra.mxu0 %v1485
    %1510 = vmatprep.subr.bf16.mxu0 0
    %1511 = vmatpush1.bf16.msra.mxu0 0
    %1512 = vmatprep.subr.bf16.mxu0 0
    %1513 = vmatpush1.bf16.msra.mxu0 0
    %1514 = vmatprep.subr.bf16.mxu0 0
    %1515 = vmatpush1.bf16.msra.mxu0 0
    %1516 = vmatprep.subr.bf16.mxu0 0
    %1517 = vmatpush1.bf16.msra.mxu0 0
    %1518 = vmatprep.subr.bf16.mxu0 0
    %1519 = vmatpush1.bf16.msra.mxu0 0
    %1520 = vmatprep.subr.bf16.mxu0 0
    %1521 = vmatpush1.bf16.msra.mxu0 0
    %1522 = vmatprep.subr.bf16.mxu0 0
    %1523 = vmatpush1.bf16.msra.mxu0 0
    %1524 = vmatprep.subr.bf16.mxu0 0
    %1525 = vmatpush1.bf16.msra.mxu0 0
    %1526 = vmatprep.mubr.bf16.mxu0 0
    %1527 = vmatmul.mubr.bf16.gmra.mrb[0].mxu0 %v1425
    %v1528 = vpop.f32.mrb[0].mxu0
    %v1529 = vadd.f32 0.0, %v1528
    %v1530 = vpop.f32.mrb[0].mxu0
    %v1531 = vpop.f32.mrb[0].mxu0
    %v1532 = vpop.f32.mrb[0].mxu0
    %1533 = vdwg.mxu0
    %1535 = vrot.lane.b32.xlu0 %v1529, 62
    %v1536 = vpop.permute.xlu0 %1535
    %v1538 = vadd.f32 %v1427, %v1536
    %v1539 = vadd.f32 %v1428, %v1536
    %v1540 = vmax.f32 %v1538, 0.0
    %v1541 = vmax.f32 %v1539, 0.0
    %vm1542 = vcmask 1048048
    %1543 = vst.msk [vmem:[#allocation2 + $0x8] sm:$0xff] %vm1542, %v1540
    %vm1544 = vcmask 236544
    %1545 = vst.msk [vmem:[#allocation2 + $0x10] sm:$0xff] %vm1544, %v1541
    %v1546 = vpack.c.bf16 %v1540, %v1540
    %v1547 = vpack.c.bf16 %v1541, %v1541
    %1550 = vrot.lane.b32.xlu0 %v1546, 66
    %v1551 = vpop.permute.xlu0 %1550
    %1552 = vrot.lane.b32.xlu0 %v1547, 66
    %v1553 = vpop.permute.xlu0 %1552
    %vm1554 = vcmask 539648
    %v1555 = vsel %vm1554, %v1551, %v1553
    %vm1556 = vcmask 777216
    %v1558 = vsel %vm1556, %v1555, 0
    %v1560 = vld [vmem:[#allocation2 + $0x10] sm:$0xff]
    %s1561 = scalar_lea.vmem %s8, 256
    %v1562 = vld [vmem:[%s1561] sm:$0xf]
    %v1563 = vld [vmem:[%s1561 + $0x4] sm:$0xf]
    %v1564 = vld [vmem:[%s1561 + $0x8] sm:$0xf]
    %v1565 = vld [vmem:[%s1561 + $0xc] sm:$0xf]
    %v1566 = vld [vmem:[%s1561 + $0x10] sm:$0xf]
    %v1567 = vld [vmem:[%s1561 + $0x14] sm:$0xf]
    %v1568 = vld [vmem:[%s1561 + $0x18] sm:$0xf]
    %v1569 = vld [vmem:[%s1561 + $0x1c] sm:$0xf]
    %v1570 = vld [vmem:[%s1561 + $0x20] sm:$0xf]
    %v1571 = vld [vmem:[%s1561 + $0x24] sm:$0xf]
    %v1572 = vld [vmem:[%s1561 + $0x28] sm:$0xf]
    %v1573 = vld [vmem:[%s1561 + $0x2c] sm:$0xf]
    %v1574 = vld [vmem:[%s1561 + $0x30] sm:$0xf]
    %v1575 = vld [vmem:[%s1561 + $0x34] sm:$0xf]
    %v1576 = vld [vmem:[%s1561 + $0x38] sm:$0xf]
    %v1577 = vld [vmem:[%s1561 + $0x3c] sm:$0xf]
    %v1594 = vunpack.c.l.b16 %v1562
    %v1595 = vunpack.c.l.b16 %v1563
    %v1596 = vunpack.c.l.b16 %v1564
    %v1597 = vunpack.c.l.b16 %v1565
    %v1598 = vunpack.c.l.b16 %v1566
    %v1599 = vunpack.c.l.b16 %v1567
    %v1600 = vunpack.c.l.b16 %v1568
    %v1601 = vunpack.c.l.b16 %v1569
    %v1602 = vunpack.c.l.b16 %v1570
    %v1603 = vunpack.c.l.b16 %v1571
    %v1604 = vunpack.c.l.b16 %v1572
    %v1605 = vunpack.c.l.b16 %v1573
    %v1606 = vunpack.c.l.b16 %v1574
    %v1607 = vunpack.c.l.b16 %v1575
    %v1608 = vunpack.c.l.b16 %v1576
    %v1609 = vunpack.c.l.b16 %v1577
    %v1610 = vpack.c.b16 %v1595, %v1594
    %v1611 = vpack.c.b16 %v1597, %v1596
    %v1612 = vpack.c.b16 %v1599, %v1598
    %v1613 = vpack.c.b16 %v1601, %v1600
    %v1614 = vpack.c.b16 %v1603, %v1602
    %v1615 = vpack.c.b16 %v1605, %v1604
    %v1616 = vpack.c.b16 %v1607, %v1606
    %v1617 = vpack.c.b16 %v1609, %v1608
    %1626 = vmatprep.subr.bf16.mxu0 0
    %1627 = vmatpush1.bf16.msra.mxu0 %v1610
    %1628 = vmatprep.subr.bf16.mxu0 0
    %1629 = vmatpush1.bf16.msra.mxu0 %v1611
    %1630 = vmatprep.subr.bf16.mxu0 0
    %1631 = vmatpush1.bf16.msra.mxu0 %v1612
    %1632 = vmatprep.subr.bf16.mxu0 0
    %1633 = vmatpush1.bf16.msra.mxu0 %v1613
    %1634 = vmatprep.subr.bf16.mxu0 0
    %1635 = vmatpush1.bf16.msra.mxu0 %v1614
    %1636 = vmatprep.subr.bf16.mxu0 0
    %1637 = vmatpush1.bf16.msra.mxu0 %v1615
    %1638 = vmatprep.subr.bf16.mxu0 0
    %1639 = vmatpush1.bf16.msra.mxu0 %v1616
    %1640 = vmatprep.subr.bf16.mxu0 0
    %1641 = vmatpush1.bf16.msra.mxu0 %v1617
    %1642 = vmatprep.subr.bf16.mxu0 0
    %1643 = vmatpush1.bf16.msra.mxu0 0
    %1644 = vmatprep.subr.bf16.mxu0 0
    %1645 = vmatpush1.bf16.msra.mxu0 0
    %1646 = vmatprep.subr.bf16.mxu0 0
    %1647 = vmatpush1.bf16.msra.mxu0 0
    %1648 = vmatprep.subr.bf16.mxu0 0
    %1649 = vmatpush1.bf16.msra.mxu0 0
    %1650 = vmatprep.subr.bf16.mxu0 0
    %1651 = vmatpush1.bf16.msra.mxu0 0
    %1652 = vmatprep.subr.bf16.mxu0 0
    %1653 = vmatpush1.bf16.msra.mxu0 0
    %1654 = vmatprep.subr.bf16.mxu0 0
    %1655 = vmatpush1.bf16.msra.mxu0 0
    %1656 = vmatprep.subr.bf16.mxu0 0
    %1657 = vmatpush1.bf16.msra.mxu0 0
    %1658 = vmatprep.mubr.bf16.mxu0 0
    %1659 = vmatmul.mubr.bf16.gmra.mrb[0].mxu0 %v1558
    %v1660 = vpop.f32.mrb[0].mxu0
    %v1661 = vadd.f32 0.0, %v1660
    %v1662 = vpop.f32.mrb[0].mxu0
    %v1663 = vpop.f32.mrb[0].mxu0
    %v1664 = vpop.f32.mrb[0].mxu0
    %1665 = vdwg.mxu0
    %1667 = vrot.lane.b32.xlu0 %v1661, 29
    %v1668 = vpop.permute.xlu0 %1667
    %v1670 = vadd.f32 %v1560, %v1668
    %v1671 = vmax.f32 %v1670, 0.0
    %vm1672 = vcmask 703720
    %1673 = vst.msk [vmem:[#allocation2 + $0x10] sm:$0xff] %vm1672, %v1671
    %v1674 = vpack.c.bf16 %v1671, %v1671
    %1676 = vrot.lane.b32.xlu0 %v1674, 99
    %v1677 = vpop.permute.xlu0 %1676
    %v1679 = vsel %vm1170, %v1677, 0
    %v1681 = vld [vmem:[#allocation2 + $0x10] sm:$0xff]
    %s1682 = scalar_lea.vmem %s8, 320
    %v1683 = vld [vmem:[%s1682] sm:$0xf]
    %v1684 = vld [vmem:[%s1682 + $0x4] sm:$0xf]
    %v1685 = vld [vmem:[%s1682 + $0x8] sm:$0xf]
    %v1686 = vld [vmem:[%s1682 + $0xc] sm:$0xf]
    %v1687 = vld [vmem:[%s1682 + $0x10] sm:$0xf]
    %v1688 = vld [vmem:[%s1682 + $0x14] sm:$0xf]
    %v1689 = vld [vmem:[%s1682 + $0x18] sm:$0xf]
    %v1690 = vld [vmem:[%s1682 + $0x1c] sm:$0xf]
    %v1691 = vld [vmem:[%s1682 + $0x20] sm:$0xf]
    %v1692 = vld [vmem:[%s1682 + $0x24] sm:$0xf]
    %v1693 = vld [vmem:[%s1682 + $0x28] sm:$0xf]
    %v1694 = vld [vmem:[%s1682 + $0x2c] sm:$0xf]
    %v1695 = vld [vmem:[%s1682 + $0x30] sm:$0xf]
    %v1696 = vld [vmem:[%s1682 + $0x34] sm:$0xf]
    %v1697 = vld [vmem:[%s1682 + $0x38] sm:$0xf]
    %v1698 = vld [vmem:[%s1682 + $0x3c] sm:$0xf]
    %v1715 = vunpack.c.l.b16 %v1683
    %v1716 = vunpack.c.l.b16 %v1684
    %v1717 = vunpack.c.l.b16 %v1685
    %v1718 = vunpack.c.l.b16 %v1686
    %v1719 = vunpack.c.l.b16 %v1687
    %v1720 = vunpack.c.l.b16 %v1688
    %v1721 = vunpack.c.l.b16 %v1689
    %v1722 = vunpack.c.l.b16 %v1690
    %v1723 = vunpack.c.l.b16 %v1691
    %v1724 = vunpack.c.l.b16 %v1692
    %v1725 = vunpack.c.l.b16 %v1693
    %v1726 = vunpack.c.l.b16 %v1694
    %v1727 = vunpack.c.l.b16 %v1695
    %v1728 = vunpack.c.l.b16 %v1696
    %v1729 = vunpack.c.l.b16 %v1697
    %v1730 = vunpack.c.l.b16 %v1698
    %v1731 = vpack.c.b16 %v1716, %v1715
    %v1732 = vpack.c.b16 %v1718, %v1717
    %v1733 = vpack.c.b16 %v1720, %v1719
    %v1734 = vpack.c.b16 %v1722, %v1721
    %v1735 = vpack.c.b16 %v1724, %v1723
    %v1736 = vpack.c.b16 %v1726, %v1725
    %v1737 = vpack.c.b16 %v1728, %v1727
    %v1738 = vpack.c.b16 %v1730, %v1729
    %1747 = vmatprep.subr.bf16.mxu0 0
    %1748 = vmatpush1.bf16.msra.mxu0 %v1731
    %1749 = vmatprep.subr.bf16.mxu0 0
    %1750 = vmatpush1.bf16.msra.mxu0 %v1732
    %1751 = vmatprep.subr.bf16.mxu0 0
    %1752 = vmatpush1.bf16.msra.mxu0 %v1733
    %1753 = vmatprep.subr.bf16.mxu0 0
    %1754 = vmatpush1.bf16.msra.mxu0 %v1734
    %1755 = vmatprep.subr.bf16.mxu0 0
    %1756 = vmatpush1.bf16.msra.mxu0 %v1735
    %1757 = vmatprep.subr.bf16.mxu0 0
    %1758 = vmatpush1.bf16.msra.mxu0 %v1736
    %1759 = vmatprep.subr.bf16.mxu0 0
    %1760 = vmatpush1.bf16.msra.mxu0 %v1737
    %1761 = vmatprep.subr.bf16.mxu0 0
    %1762 = vmatpush1.bf16.msra.mxu0 %v1738
    %1763 = vmatprep.subr.bf16.mxu0 0
    %1764 = vmatpush1.bf16.msra.mxu0 0
    %1765 = vmatprep.subr.bf16.mxu0 0
    %1766 = vmatpush1.bf16.msra.mxu0 0
    %1767 = vmatprep.subr.bf16.mxu0 0
    %1768 = vmatpush1.bf16.msra.mxu0 0
    %1769 = vmatprep.subr.bf16.mxu0 0
    %1770 = vmatpush1.bf16.msra.mxu0 0
    %1771 = vmatprep.subr.bf16.mxu0 0
    %1772 = vmatpush1.bf16.msra.mxu0 0
    %1773 = vmatprep.subr.bf16.mxu0 0
    %1774 = vmatpush1.bf16.msra.mxu0 0
    %1775 = vmatprep.subr.bf16.mxu0 0
    %1776 = vmatpush1.bf16.msra.mxu0 0
    %1777 = vmatprep.subr.bf16.mxu0 0
    %1778 = vmatpush1.bf16.msra.mxu0 0
    %1779 = vmatprep.mubr.bf16.mxu0 0
    %1780 = vmatmul.mubr.bf16.gmra.mrb[0].mxu0 %v1679
    %v1781 = vpop.f32.mrb[0].mxu0
    %v1782 = vadd.f32 0.0, %v1781
    %v1783 = vpop.f32.mrb[0].mxu0
    %v1784 = vpop.f32.mrb[0].mxu0
    %v1785 = vpop.f32.mrb[0].mxu0
    %1786 = vdwg.mxu0
    %1788 = vrot.lane.b32.xlu0 %v1782, 86
    %v1789 = vpop.permute.xlu0 %1788
    %v1791 = vadd.f32 %v1681, %v1789
    %v1792 = vmax.f32 %v1791, 0.0
    %vm1793 = vcmask 1015472
    %1794 = vst.msk [vmem:[#allocation2 + $0x10] sm:$0xff] %vm1793, %v1792
    %v1795 = vpack.c.bf16 %v1792, %v1792
    %1797 = vrot.lane.b32.xlu0 %v1795, 42
    %v1798 = vpop.permute.xlu0 %1797
    %vm1799 = vcmask 310272
    %v1801 = vsel %vm1799, %v1798, 0
    %v1803 = vld [vmem:[#allocation2 + $0x10] sm:$0xff]
    %v1804 = vld [vmem:[#allocation2 + $0x18] sm:$0xff]
    %s1805 = scalar_lea.vmem %s8, 384
    %v1806 = vld [vmem:[%s1805] sm:$0xf]
    %v1807 = vld [vmem:[%s1805 + $0x4] sm:$0xf]
    %v1808 = vld [vmem:[%s1805 + $0x8] sm:$0xf]
    %v1809 = vld [vmem:[%s1805 + $0xc] sm:$0xf]
    %v1810 = vld [vmem:[%s1805 + $0x10] sm:$0xf]
    %v1811 = vld [vmem:[%s1805 + $0x14] sm:$0xf]
    %v1812 = vld [vmem:[%s1805 + $0x18] sm:$0xf]
    %v1813 = vld [vmem:[%s1805 + $0x1c] sm:$0xf]
    %v1814 = vld [vmem:[%s1805 + $0x20] sm:$0xf]
    %v1815 = vld [vmem:[%s1805 + $0x24] sm:$0xf]
    %v1816 = vld [vmem:[%s1805 + $0x28] sm:$0xf]
    %v1817 = vld [vmem:[%s1805 + $0x2c] sm:$0xf]
    %v1818 = vld [vmem:[%s1805 + $0x30] sm:$0xf]
    %v1819 = vld [vmem:[%s1805 + $0x34] sm:$0xf]
    %v1820 = vld [vmem:[%s1805 + $0x38] sm:$0xf]
    %v1821 = vld [vmem:[%s1805 + $0x3c] sm:$0xf]
    %v1838 = vunpack.c.l.b16 %v1806
    %v1839 = vunpack.c.l.b16 %v1807
    %v1840 = vunpack.c.l.b16 %v1808
    %v1841 = vunpack.c.l.b16 %v1809
    %v1842 = vunpack.c.l.b16 %v1810
    %v1843 = vunpack.c.l.b16 %v1811
    %v1844 = vunpack.c.l.b16 %v1812
    %v1845 = vunpack.c.l.b16 %v1813
    %v1846 = vunpack.c.l.b16 %v1814
    %v1847 = vunpack.c.l.b16 %v1815
    %v1848 = vunpack.c.l.b16 %v1816
    %v1849 = vunpack.c.l.b16 %v1817
    %v1850 = vunpack.c.l.b16 %v1818
    %v1851 = vunpack.c.l.b16 %v1819
    %v1852 = vunpack.c.l.b16 %v1820
    %v1853 = vunpack.c.l.b16 %v1821
    %v1854 = vpack.c.b16 %v1839, %v1838
    %v1855 = vpack.c.b16 %v1841, %v1840
    %v1856 = vpack.c.b16 %v1843, %v1842
    %v1857 = vpack.c.b16 %v1845, %v1844
    %v1858 = vpack.c.b16 %v1847, %v1846
    %v1859 = vpack.c.b16 %v1849, %v1848
    %v1860 = vpack.c.b16 %v1851, %v1850
    %v1861 = vpack.c.b16 %v1853, %v1852
    %1870 = vmatprep.subr.bf16.mxu0 0
    %1871 = vmatpush1.bf16.msra.mxu0 %v1854
    %1872 = vmatprep.subr.bf16.mxu0 0
    %1873 = vmatpush1.bf16.msra.mxu0 %v1855
    %1874 = vmatprep.subr.bf16.mxu0 0
    %1875 = vmatpush1.bf16.msra.mxu0 %v1856
    %1876 = vmatprep.subr.bf16.mxu0 0
    %1877 = vmatpush1.bf16.msra.mxu0 %v1857
    %1878 = vmatprep.subr.bf16.mxu0 0
    %1879 = vmatpush1.bf16.msra.mxu0 %v1858
    %1880 = vmatprep.subr.bf16.mxu0 0
    %1881 = vmatpush1.bf16.msra.mxu0 %v1859
    %1882 = vmatprep.subr.bf16.mxu0 0
    %1883 = vmatpush1.bf16.msra.mxu0 %v1860
    %1884 = vmatprep.subr.bf16.mxu0 0
    %1885 = vmatpush1.bf16.msra.mxu0 %v1861
    %1886 = vmatprep.subr.bf16.mxu0 0
    %1887 = vmatpush1.bf16.msra.mxu0 0
    %1888 = vmatprep.subr.bf16.mxu0 0
    %1889 = vmatpush1.bf16.msra.mxu0 0
    %1890 = vmatprep.subr.bf16.mxu0 0
    %1891 = vmatpush1.bf16.msra.mxu0 0
    %1892 = vmatprep.subr.bf16.mxu0 0
    %1893 = vmatpush1.bf16.msra.mxu0 0
    %1894 = vmatprep.subr.bf16.mxu0 0
    %1895 = vmatpush1.bf16.msra.mxu0 0
    %1896 = vmatprep.subr.bf16.mxu0 0
    %1897 = vmatpush1.bf16.msra.mxu0 0
    %1898 = vmatprep.subr.bf16.mxu0 0
    %1899 = vmatpush1.bf16.msra.mxu0 0
    %1900 = vmatprep.subr.bf16.mxu0 0
    %1901 = vmatpush1.bf16.msra.mxu0 0
    %1902 = vmatprep.mubr.bf16.mxu0 0
    %1903 = vmatmul.mubr.bf16.gmra.mrb[0].mxu0 %v1801
    %v1904 = vpop.f32.mrb[0].mxu0
    %v1905 = vadd.f32 0.0, %v1904
    %v1906 = vpop.f32.mrb[0].mxu0
    %v1907 = vpop.f32.mrb[0].mxu0
    %v1908 = vpop.f32.mrb[0].mxu0
    %1909 = vdwg.mxu0
    %1911 = vrot.lane.b32.xlu0 %v1905, 124
    %v1912 = vpop.permute.xlu0 %1911
    %v1914 = vadd.f32 %v1803, %v1912
    %v1915 = vadd.f32 %v1804, %v1912
    %v1916 = vmax.f32 %v1914, 0.0
    %v1917 = vmax.f32 %v1915, 0.0
    %vm1918 = vcmask 1048544
    %1919 = vst.msk [vmem:[#allocation2 + $0x10] sm:$0xff] %vm1918, %v1916
    %vm1920 = vcmask 277504
    %1921 = vst.msk [vmem:[#allocation2 + $0x18] sm:$0xff] %vm1920, %v1917
    %v1922 = vpack.c.bf16 %v1916, %v1916
    %v1923 = vpack.c.bf16 %v1917, %v1917
    %1926 = vrot.lane.b32.xlu0 %v1922, 4
    %v1927 = vpop.permute.xlu0 %1926
    %1928 = vrot.lane.b32.xlu0 %v1923, 4
    %v1929 = vpop.permute.xlu0 %1928
    %vm1930 = vcmask 31744
    %v1931 = vsel %vm1930, %v1927, %v1929
    %v1933 = vsel %vm1799, %v1931, 0
    %v1935 = vld [vmem:[#allocation2 + $0x18] sm:$0xff]
    %s1936 = scalar_lea.vmem %s8, 448
    %v1937 = vld [vmem:[%s1936] sm:$0xf]
    %v1938 = vld [vmem:[%s1936 + $0x4] sm:$0xf]
    %v1939 = vld [vmem:[%s1936 + $0x8] sm:$0xf]
    %v1940 = vld [vmem:[%s1936 + $0xc] sm:$0xf]
    %v1941 = vld [vmem:[%s1936 + $0x10] sm:$0xf]
    %v1942 = vld [vmem:[%s1936 + $0x14] sm:$0xf]
    %v1943 = vld [vmem:[%s1936 + $0x18] sm:$0xf]
    %v1944 = vld [vmem:[%s1936 + $0x1c] sm:$0xf]
    %v1945 = vld [vmem:[%s1936 + $0x20] sm:$0xf]
    %v1946 = vld [vmem:[%s1936 + $0x24] sm:$0xf]
    %v1947 = vld [vmem:[%s1936 + $0x28] sm:$0xf]
    %v1948 = vld [vmem:[%s1936 + $0x2c] sm:$0xf]
    %v1949 = vld [vmem:[%s1936 + $0x30] sm:$0xf]
    %v1950 = vld [vmem:[%s1936 + $0x34] sm:$0xf]
    %v1951 = vld [vmem:[%s1936 + $0x38] sm:$0xf]
    %v1952 = vld [vmem:[%s1936 + $0x3c] sm:$0xf]
    %v1969 = vunpack.c.l.b16 %v1937
    %v1970 = vunpack.c.l.b16 %v1938
    %v1971 = vunpack.c.l.b16 %v1939
    %v1972 = vunpack.c.l.b16 %v1940
    %v1973 = vunpack.c.l.b16 %v1941
    %v1974 = vunpack.c.l.b16 %v1942
    %v1975 = vunpack.c.l.b16 %v1943
    %v1976 = vunpack.c.l.b16 %v1944
    %v1977 = vunpack.c.l.b16 %v1945
    %v1978 = vunpack.c.l.b16 %v1946
    %v1979 = vunpack.c.l.b16 %v1947
    %v1980 = vunpack.c.l.b16 %v1948
    %v1981 = vunpack.c.l.b16 %v1949
    %v1982 = vunpack.c.l.b16 %v1950
    %v1983 = vunpack.c.l.b16 %v1951
    %v1984 = vunpack.c.l.b16 %v1952
    %v1985 = vpack.c.b16 %v1970, %v1969
    %v1986 = vpack.c.b16 %v1972, %v1971
    %v1987 = vpack.c.b16 %v1974, %v1973
    %v1988 = vpack.c.b16 %v1976, %v1975
    %v1989 = vpack.c.b16 %v1978, %v1977
    %v1990 = vpack.c.b16 %v1980, %v1979
    %v1991 = vpack.c.b16 %v1982, %v1981
    %v1992 = vpack.c.b16 %v1984, %v1983
    %2001 = vmatprep.subr.bf16.mxu0 0
    %2002 = vmatpush1.bf16.msra.mxu0 %v1985
    %2003 = vmatprep.subr.bf16.mxu0 0
    %2004 = vmatpush1.bf16.msra.mxu0 %v1986
    %2005 = vmatprep.subr.bf16.mxu0 0
    %2006 = vmatpush1.bf16.msra.mxu0 %v1987
    %2007 = vmatprep.subr.bf16.mxu0 0
    %2008 = vmatpush1.bf16.msra.mxu0 %v1988
    %2009 = vmatprep.subr.bf16.mxu0 0
    %2010 = vmatpush1.bf16.msra.mxu0 %v1989
    %2011 = vmatprep.subr.bf16.mxu0 0
    %2012 = vmatpush1.bf16.msra.mxu0 %v1990
    %2013 = vmatprep.subr.bf16.mxu0 0
    %2014 = vmatpush1.bf16.msra.mxu0 %v1991
    %2015 = vmatprep.subr.bf16.mxu0 0
    %2016 = vmatpush1.bf16.msra.mxu0 %v1992
    %2017 = vmatprep.subr.bf16.mxu0 0
    %2018 = vmatpush1.bf16.msra.mxu0 0
    %2019 = vmatprep.subr.bf16.mxu0 0
    %2020 = vmatpush1.bf16.msra.mxu0 0
    %2021 = vmatprep.subr.bf16.mxu0 0
    %2022 = vmatpush1.bf16.msra.mxu0 0
    %2023 = vmatprep.subr.bf16.mxu0 0
    %2024 = vmatpush1.bf16.msra.mxu0 0
    %2025 = vmatprep.subr.bf16.mxu0 0
    %2026 = vmatpush1.bf16.msra.mxu0 0
    %2027 = vmatprep.subr.bf16.mxu0 0
    %2028 = vmatpush1.bf16.msra.mxu0 0
    %2029 = vmatprep.subr.bf16.mxu0 0
    %2030 = vmatpush1.bf16.msra.mxu0 0
    %2031 = vmatprep.subr.bf16.mxu0 0
    %2032 = vmatpush1.bf16.msra.mxu0 0
    %2033 = vmatprep.mubr.bf16.mxu0 0
    %2034 = vmatmul.mubr.bf16.gmra.mrb[0].mxu0 %v1933
    %v2035 = vpop.f32.mrb[0].mxu0
    %v2036 = vadd.f32 0.0, %v2035
    %v2037 = vpop.f32.mrb[0].mxu0
    %v2038 = vpop.f32.mrb[0].mxu0
    %v2039 = vpop.f32.mrb[0].mxu0
    %2040 = vdwg.mxu0
    %2042 = vrot.lane.b32.xlu0 %v2036, 34
    %v2043 = vpop.permute.xlu0 %2042
    %v2045 = vadd.f32 %v1935, %v2043
    %v2046 = vmax.f32 %v2045, 0.0
    %vm2047 = vcmask 589072
    %2048 = vst.msk [vmem:[#allocation2 + $0x18] sm:$0xff] %vm2047, %v2046
    %v2049 = vld [vmem:[#allocation2] sm:$0xff]
    %v2050 = vld [vmem:[#allocation2 + $0x8] sm:$0xff]
    %v2051 = vld [vmem:[#allocation2 + $0x10] sm:$0xff]
    %v2052 = vld [vmem:[#allocation2 + $0x18] sm:$0xff]
    %v2053 = vpack.c.bf16 %v2049, %v2049
    %v2054 = vpack.c.bf16 %v2050, %v2050
    %v2055 = vpack.c.bf16 %v2051, %v2051
    %v2056 = vpack.c.bf16 %v2052, %v2052
    %v2057 = vld [vmem:[%s9] sm:$0xff]
    %v2058 = vld [vmem:[%s9 + $0x8] sm:$0xff]
    %v2059 = vld [vmem:[%s9 + $0x10] sm:$0xff]
    %v2060 = vld [vmem:[%s9 + $0x18] sm:$0xff]
    %v2061 = vld [vmem:[%s9 + $0x20] sm:$0xff]
    %v2062 = vld [vmem:[%s9 + $0x28] sm:$0xff]
    %v2063 = vld [vmem:[%s9 + $0x30] sm:$0xff]
    %v2064 = vld [vmem:[%s9 + $0x38] sm:$0xff]
    %v2065 = vld [vmem:[%s9 + $0x40] sm:$0xff]
    %v2066 = vld [vmem:[%s9 + $0x48] sm:$0xff]
    %v2067 = vld [vmem:[%s9 + $0x50] sm:$0xff]
    %v2068 = vld [vmem:[%s9 + $0x58] sm:$0xff]
    %v2069 = vld [vmem:[%s9 + $0x60] sm:$0xff]
    %v2070 = vld [vmem:[%s9 + $0x68] sm:$0xff]
    %v2071 = vld [vmem:[%s9 + $0x70] sm:$0xff]
    %v2072 = vld [vmem:[%s9 + $0x78] sm:$0xff]
    %v2073 = vld [vmem:[%s9 + $0x80] sm:$0xff]
    %v2074 = vld [vmem:[%s9 + $0x88] sm:$0xff]
    %v2075 = vld [vmem:[%s9 + $0x90] sm:$0xff]
    %v2076 = vld [vmem:[%s9 + $0x98] sm:$0xff]
    %v2077 = vld [vmem:[%s9 + $0xa0] sm:$0xff]
    %v2078 = vld [vmem:[%s9 + $0xa8] sm:$0xff]
    %v2079 = vld [vmem:[%s9 + $0xb0] sm:$0xff]
    %v2080 = vld [vmem:[%s9 + $0xb8] sm:$0xff]
    %v2081 = vld [vmem:[%s9 + $0xc0] sm:$0xff]
    %v2082 = vld [vmem:[%s9 + $0xc8] sm:$0xff]
    %v2083 = vld [vmem:[%s9 + $0xd0] sm:$0xff]
    %v2084 = vld [vmem:[%s9 + $0xd8] sm:$0xff]
    %v2085 = vld [vmem:[%s9 + $0xe0] sm:$0xff]
    %v2086 = vld [vmem:[%s9 + $0xe8] sm:$0xff]
    %v2087 = vld [vmem:[%s9 + $0xf0] sm:$0xff]
    %v2088 = vld [vmem:[%s9 + $0xf8] sm:$0xff]
    %v2089 = vld [vmem:[%s9 + $0x100] sm:$0xff]
    %v2090 = vld [vmem:[%s9 + $0x108] sm:$0xff]
    %v2091 = vld [vmem:[%s9 + $0x110] sm:$0xff]
    %v2092 = vld [vmem:[%s9 + $0x118] sm:$0xff]
    %v2093 = vld [vmem:[%s9 + $0x120] sm:$0xff]
    %v2094 = vld [vmem:[%s9 + $0x128] sm:$0xff]
    %v2095 = vld [vmem:[%s9 + $0x130] sm:$0xff]
    %v2096 = vld [vmem:[%s9 + $0x138] sm:$0xff]
    %v2097 = vld [vmem:[%s9 + $0x140] sm:$0xff]
    %v2098 = vld [vmem:[%s9 + $0x148] sm:$0xff]
    %v2099 = vld [vmem:[%s9 + $0x150] sm:$0xff]
    %v2100 = vld [vmem:[%s9 + $0x158] sm:$0xff]
    %v2101 = vld [vmem:[%s9 + $0x160] sm:$0xff]
    %v2102 = vld [vmem:[%s9 + $0x168] sm:$0xff]
    %v2103 = vld [vmem:[%s9 + $0x170] sm:$0xff]
    %v2104 = vld [vmem:[%s9 + $0x178] sm:$0xff]
    %v2105 = vld [vmem:[%s9 + $0x180] sm:$0xff]
    %v2106 = vld [vmem:[%s9 + $0x188] sm:$0xff]
    %v2107 = vld [vmem:[%s9 + $0x190] sm:$0xff]
    %v2108 = vld [vmem:[%s9 + $0x198] sm:$0xff]
    %v2109 = vld [vmem:[%s9 + $0x1a0] sm:$0xff]
    %v2110 = vld [vmem:[%s9 + $0x1a8] sm:$0xff]
    %v2111 = vld [vmem:[%s9 + $0x1b0] sm:$0xff]
    %v2112 = vld [vmem:[%s9 + $0x1b8] sm:$0xff]
    %v2113 = vld [vmem:[%s9 + $0x1c0] sm:$0xff]
    %v2114 = vld [vmem:[%s10] sm:$0x3]
    %v2116 = vlaneseq
    %v2117 = vshrl.u32 %v2116, 7
    %v2118 = vsub.s32 0, %v2117
    %v2119 = vrot.slane %v2114, %v2118
    %v2120 = vlaneseq
    %v2121 = vshrl.u32 %v2120, 7
    %v2122 = vsub.s32 1, %v2121
    %v2123 = vrot.slane %v2114, %v2122
    %v2183 = vunpack.c.l.b16 %v2057
    %v2184 = vunpack.c.h.b16 %v2057
    %v2185 = vunpack.c.l.b16 %v2058
    %v2186 = vunpack.c.h.b16 %v2058
    %v2187 = vunpack.c.l.b16 %v2059
    %v2188 = vunpack.c.h.b16 %v2059
    %v2189 = vunpack.c.l.b16 %v2060
    %v2190 = vunpack.c.h.b16 %v2060
    %v2191 = vunpack.c.l.b16 %v2061
    %v2192 = vunpack.c.h.b16 %v2061
    %v2193 = vunpack.c.l.b16 %v2062
    %v2194 = vunpack.c.h.b16 %v2062
    %v2195 = vunpack.c.l.b16 %v2063
    %v2196 = vunpack.c.h.b16 %v2063
    %v2197 = vunpack.c.l.b16 %v2064
    %v2198 = vunpack.c.h.b16 %v2064
    %v2199 = vunpack.c.l.b16 %v2065
    %v2200 = vunpack.c.h.b16 %v2065
    %v2201 = vunpack.c.l.b16 %v2066
    %v2202 = vunpack.c.h.b16 %v2066
    %v2203 = vunpack.c.l.b16 %v2067
    %v2204 = vunpack.c.h.b16 %v2067
    %v2205 = vunpack.c.l.b16 %v2068
    %v2206 = vunpack.c.h.b16 %v2068
    %v2207 = vunpack.c.l.b16 %v2069
    %v2208 = vunpack.c.h.b16 %v2069
    %v2209 = vunpack.c.l.b16 %v2070
    %v2210 = vunpack.c.h.b16 %v2070
    %v2211 = vunpack.c.l.b16 %v2071
    %v2212 = vunpack.c.h.b16 %v2071
    %v2213 = vunpack.c.l.b16 %v2072
    %v2214 = vunpack.c.h.b16 %v2072
    %v2215 = vunpack.c.l.b16 %v2073
    %v2216 = vunpack.c.h.b16 %v2073
    %v2217 = vunpack.c.l.b16 %v2074
    %v2218 = vunpack.c.h.b16 %v2074
    %v2219 = vunpack.c.l.b16 %v2075
    %v2220 = vunpack.c.h.b16 %v2075
    %v2221 = vunpack.c.l.b16 %v2076
    %v2222 = vunpack.c.h.b16 %v2076
    %v2223 = vunpack.c.l.b16 %v2077
    %v2224 = vunpack.c.h.b16 %v2077
    %v2225 = vunpack.c.l.b16 %v2078
    %v2226 = vunpack.c.h.b16 %v2078
    %v2227 = vunpack.c.l.b16 %v2079
    %v2228 = vunpack.c.h.b16 %v2079
    %v2229 = vunpack.c.l.b16 %v2080
    %v2230 = vunpack.c.h.b16 %v2080
    %v2231 = vunpack.c.l.b16 %v2081
    %v2232 = vunpack.c.h.b16 %v2081
    %v2233 = vunpack.c.l.b16 %v2082
    %v2234 = vunpack.c.h.b16 %v2082
    %v2235 = vunpack.c.l.b16 %v2083
    %v2236 = vunpack.c.h.b16 %v2083
    %v2237 = vunpack.c.l.b16 %v2084
    %v2238 = vunpack.c.h.b16 %v2084
    %v2239 = vunpack.c.l.b16 %v2085
    %v2240 = vunpack.c.h.b16 %v2085
    %v2241 = vunpack.c.l.b16 %v2086
    %v2242 = vunpack.c.h.b16 %v2086
    %v2243 = vunpack.c.l.b16 %v2087
    %v2244 = vunpack.c.h.b16 %v2087
    %v2245 = vunpack.c.l.b16 %v2088
    %v2246 = vunpack.c.h.b16 %v2088
    %v2247 = vunpack.c.l.b16 %v2089
    %v2248 = vunpack.c.h.b16 %v2089
    %v2249 = vunpack.c.l.b16 %v2090
    %v2250 = vunpack.c.h.b16 %v2090
    %v2251 = vunpack.c.l.b16 %v2091
    %v2252 = vunpack.c.h.b16 %v2091
    %v2253 = vunpack.c.l.b16 %v2092
    %v2254 = vunpack.c.h.b16 %v2092
    %v2255 = vunpack.c.l.b16 %v2093
    %v2256 = vunpack.c.h.b16 %v2093
    %v2257 = vunpack.c.l.b16 %v2094
    %v2258 = vunpack.c.h.b16 %v2094
    %v2259 = vunpack.c.l.b16 %v2095
    %v2260 = vunpack.c.h.b16 %v2095
    %v2261 = vunpack.c.l.b16 %v2096
    %v2262 = vunpack.c.h.b16 %v2096
    %v2263 = vunpack.c.l.b16 %v2097
    %v2264 = vunpack.c.h.b16 %v2097
    %v2265 = vunpack.c.l.b16 %v2098
    %v2266 = vunpack.c.h.b16 %v2098
    %v2267 = vunpack.c.l.b16 %v2099
    %v2268 = vunpack.c.h.b16 %v2099
    %v2269 = vunpack.c.l.b16 %v2100
    %v2270 = vunpack.c.h.b16 %v2100
    %v2271 = vunpack.c.l.b16 %v2101
    %v2272 = vunpack.c.h.b16 %v2101
    %v2273 = vunpack.c.l.b16 %v2102
    %v2274 = vunpack.c.h.b16 %v2102
    %v2275 = vunpack.c.l.b16 %v2103
    %v2276 = vunpack.c.h.b16 %v2103
    %v2277 = vunpack.c.l.b16 %v2104
    %v2278 = vunpack.c.h.b16 %v2104
    %v2279 = vunpack.c.l.b16 %v2105
    %v2280 = vunpack.c.h.b16 %v2105
    %v2281 = vunpack.c.l.b16 %v2106
    %v2282 = vunpack.c.h.b16 %v2106
    %v2283 = vunpack.c.l.b16 %v2107
    %v2284 = vunpack.c.h.b16 %v2107
    %v2285 = vunpack.c.l.b16 %v2108
    %v2286 = vunpack.c.h.b16 %v2108
    %v2287 = vunpack.c.l.b16 %v2109
    %v2288 = vunpack.c.h.b16 %v2109
    %v2289 = vunpack.c.l.b16 %v2110
    %v2290 = vunpack.c.h.b16 %v2110
    %v2291 = vunpack.c.l.b16 %v2111
    %v2292 = vunpack.c.h.b16 %v2111
    %v2293 = vunpack.c.l.b16 %v2112
    %v2294 = vunpack.c.h.b16 %v2112
    %v2295 = vunpack.c.l.b16 %v2113
    %v2296 = vunpack.c.h.b16 %v2113
    %v2297 = vpack.c.b16 %v2185, %v2183
    %v2298 = vpack.c.b16 %v2186, %v2184
    %v2299 = vpack.c.b16 %v2189, %v2187
    %v2300 = vpack.c.b16 %v2190, %v2188
    %v2301 = vpack.c.b16 %v2193, %v2191
    %v2302 = vpack.c.b16 %v2194, %v2192
    %v2303 = vpack.c.b16 %v2197, %v2195
    %v2304 = vpack.c.b16 %v2198, %v2196
    %v2305 = vpack.c.b16 %v2201, %v2199
    %v2306 = vpack.c.b16 %v2202, %v2200
    %v2307 = vpack.c.b16 %v2205, %v2203
    %v2308 = vpack.c.b16 %v2206, %v2204
    %v2309 = vpack.c.b16 %v2209, %v2207
    %v2310 = vpack.c.b16 %v2210, %v2208
    %v2311 = vpack.c.b16 %v2213, %v2211
    %v2312 = vpack.c.b16 %v2214, %v2212
    %v2313 = vpack.c.b16 %v2217, %v2215
    %v2314 = vpack.c.b16 %v2218, %v2216
    %v2315 = vpack.c.b16 %v2221, %v2219
    %v2316 = vpack.c.b16 %v2222, %v2220
    %v2317 = vpack.c.b16 %v2225, %v2223
    %v2318 = vpack.c.b16 %v2226, %v2224
    %v2319 = vpack.c.b16 %v2229, %v2227
    %v2320 = vpack.c.b16 %v2230, %v2228
    %v2321 = vpack.c.b16 %v2233, %v2231
    %v2322 = vpack.c.b16 %v2234, %v2232
    %v2323 = vpack.c.b16 %v2237, %v2235
    %v2324 = vpack.c.b16 %v2238, %v2236
    %v2325 = vpack.c.b16 %v2241, %v2239
    %v2326 = vpack.c.b16 %v2242, %v2240
    %v2327 = vpack.c.b16 %v2245, %v2243
    %v2328 = vpack.c.b16 %v2246, %v2244
    %v2329 = vpack.c.b16 %v2249, %v2247
    %v2330 = vpack.c.b16 %v2250, %v2248
    %v2331 = vpack.c.b16 %v2253, %v2251
    %v2332 = vpack.c.b16 %v2254, %v2252
    %v2333 = vpack.c.b16 %v2257, %v2255
    %v2334 = vpack.c.b16 %v2258, %v2256
    %v2335 = vpack.c.b16 %v2261, %v2259
    %v2336 = vpack.c.b16 %v2262, %v2260
    %v2337 = vpack.c.b16 %v2265, %v2263
    %v2338 = vpack.c.b16 %v2266, %v2264
    %v2339 = vpack.c.b16 %v2269, %v2267
    %v2340 = vpack.c.b16 %v2270, %v2268
    %v2341 = vpack.c.b16 %v2273, %v2271
    %v2342 = vpack.c.b16 %v2274, %v2272
    %v2343 = vpack.c.b16 %v2277, %v2275
    %v2344 = vpack.c.b16 %v2278, %v2276
    %v2345 = vpack.c.b16 %v2281, %v2279
    %v2346 = vpack.c.b16 %v2282, %v2280
    %v2347 = vpack.c.b16 %v2285, %v2283
    %v2348 = vpack.c.b16 %v2286, %v2284
    %v2349 = vpack.c.b16 %v2289, %v2287
    %v2350 = vpack.c.b16 %v2290, %v2288
    %v2351 = vpack.c.b16 %v2293, %v2291
    %v2352 = vpack.c.b16 %v2294, %v2292
    %v2353 = vpack.c.b16 %v2295, %v2295
    %v2354 = vpack.c.b16 %v2296, %v2296
    %v2412 = vsel %vm106, %v2056, 0
    %v2415 = vsel %vm110, %v2353, 0
    %v2418 = vsel %vm110, %v2354, 0
    %2420 = vmatprep.subr.bf16.mxu0 %v2298
    %2421 = vmatpush1.bf16.msra.mxu0 %v2297
    %2422 = vmatprep.subr.bf16.mxu0 %v2300
    %2423 = vmatpush1.bf16.msra.mxu0 %v2299
    %2424 = vmatprep.subr.bf16.mxu0 %v2302
    %2425 = vmatpush1.bf16.msra.mxu0 %v2301
    %2426 = vmatprep.subr.bf16.mxu0 %v2304
    %2427 = vmatpush1.bf16.msra.mxu0 %v2303
    %2428 = vmatprep.subr.bf16.mxu0 %v2306
    %2429 = vmatpush1.bf16.msra.mxu0 %v2305
    %2430 = vmatprep.subr.bf16.mxu0 %v2308
    %2431 = vmatpush1.bf16.msra.mxu0 %v2307
    %2432 = vmatprep.subr.bf16.mxu0 %v2310
    %2433 = vmatpush1.bf16.msra.mxu0 %v2309
    %2434 = vmatprep.subr.bf16.mxu0 %v2312
    %2435 = vmatpush1.bf16.msra.mxu0 %v2311
    %2436 = vmatprep.subr.bf16.mxu0 %v2314
    %2437 = vmatpush1.bf16.msra.mxu0 %v2313
    %2438 = vmatprep.subr.bf16.mxu0 %v2316
    %2439 = vmatpush1.bf16.msra.mxu0 %v2315
    %2440 = vmatprep.subr.bf16.mxu0 %v2318
    %2441 = vmatpush1.bf16.msra.mxu0 %v2317
    %2442 = vmatprep.subr.bf16.mxu0 %v2320
    %2443 = vmatpush1.bf16.msra.mxu0 %v2319
    %2444 = vmatprep.subr.bf16.mxu0 %v2322
    %2445 = vmatpush1.bf16.msra.mxu0 %v2321
    %2446 = vmatprep.subr.bf16.mxu0 %v2324
    %2447 = vmatpush1.bf16.msra.mxu0 %v2323
    %2448 = vmatprep.subr.bf16.mxu0 %v2326
    %2449 = vmatpush1.bf16.msra.mxu0 %v2325
    %2450 = vmatprep.subr.bf16.mxu0 %v2328
    %2451 = vmatpush1.bf16.msra.mxu0 %v2327
    %2452 = vmatprep.mubr.bf16.mxu0 %v2054
    %2453 = vmatmul.mubr.bf16.gmra.mrb[0].mxu0 %v2053
    %v2454 = vpop.f32.mrb[0].mxu0
    %v2455 = vadd.f32 %v2119, %v2454
    %v2456 = vpop.f32.mrb[0].mxu0
    %v2457 = vadd.f32 %v2123, %v2456
    %v2458 = vpop.f32.mrb[0].mxu0
    %v2459 = vpop.f32.mrb[0].mxu0
    %2460 = vdwg.mxu0
    %2461 = vmatprep.subr.bf16.mxu0 %v2330
    %2462 = vmatpush1.bf16.msra.mxu0 %v2329
    %2463 = vmatprep.subr.bf16.mxu0 %v2332
    %2464 = vmatpush1.bf16.msra.mxu0 %v2331
    %2465 = vmatprep.subr.bf16.mxu0 %v2334
    %2466 = vmatpush1.bf16.msra.mxu0 %v2333
    %2467 = vmatprep.subr.bf16.mxu0 %v2336
    %2468 = vmatpush1.bf16.msra.mxu0 %v2335
    %2469 = vmatprep.subr.bf16.mxu0 %v2338
    %2470 = vmatpush1.bf16.msra.mxu0 %v2337
    %2471 = vmatprep.subr.bf16.mxu0 %v2340
    %2472 = vmatpush1.bf16.msra.mxu0 %v2339
    %2473 = vmatprep.subr.bf16.mxu0 %v2342
    %2474 = vmatpush1.bf16.msra.mxu0 %v2341
    %2475 = vmatprep.subr.bf16.mxu0 %v2344
    %2476 = vmatpush1.bf16.msra.mxu0 %v2343
    %2477 = vmatprep.subr.bf16.mxu0 %v2346
    %2478 = vmatpush1.bf16.msra.mxu0 %v2345
    %2479 = vmatprep.subr.bf16.mxu0 %v2348
    %2480 = vmatpush1.bf16.msra.mxu0 %v2347
    %2481 = vmatprep.subr.bf16.mxu0 %v2350
    %2482 = vmatpush1.bf16.msra.mxu0 %v2349
    %2483 = vmatprep.subr.bf16.mxu0 %v2352
    %2484 = vmatpush1.bf16.msra.mxu0 %v2351
    %2485 = vmatprep.subr.bf16.mxu0 %v2418
    %2486 = vmatpush1.bf16.msra.mxu0 %v2415
    %2487 = vmatprep.subr.bf16.mxu0 0
    %2488 = vmatpush1.bf16.msra.mxu0 0
    %2489 = vmatprep.subr.bf16.mxu0 0
    %2490 = vmatpush1.bf16.msra.mxu0 0
    %2491 = vmatprep.subr.bf16.mxu0 0
    %2492 = vmatpush1.bf16.msra.mxu0 0
    %2493 = vmatprep.mubr.bf16.mxu0 %v2412
    %2494 = vmatmul.mubr.bf16.gmra.mrb[0].mxu0 %v2055
    %v2495 = vpop.f32.mrb[0].mxu0
    %v2496 = vadd.f32 %v2455, %v2495
    %v2497 = vpop.f32.mrb[0].mxu0
    %v2498 = vadd.f32 %v2457, %v2497
    %v2499 = vpop.f32.mrb[0].mxu0
    %v2500 = vpop.f32.mrb[0].mxu0
    %2501 = vdwg.mxu0
    %2502 = vst [vmem:[#allocation8] sm:$0xff] %v2496
    %vm2503 = vcmask 130048
    %2504 = vst.msk [vmem:[#allocation8 + $0x8] sm:$0xff] %vm2503, %v2498
    // Predicated region
    $region54: #{hierarchical_pose_encoder.1} parent=1 // pred_check
      _
    $region55: #{hierarchical_pose_encoder.1} parent=1 // pred_check_branch
      %2506 = sbr.rel (0) target = $region57
    $region56: #{hierarchical_pose_encoder.1} parent=1 // pred_region
      %s2508 = ssub.s32 256, 256
      %2509 = vsyncadd [#allocation5], %s2508
      %s2511 = sshll.u32 [#allocation8], 4
      %s2512 = int_to_ptr.vmem [resolvable:$true] %s2511
      %2514 = dma.vmem_to_hbm [thread:$0]  %s2512, 256, %s11, [#allocation5]
    $region57: #{hierarchical_pose_encoder.1} parent=1 // pred_fallthru
      _
    // Predicated region
    $region58: #{hierarchical_pose_encoder.1} parent=1 // pred_check
      _
    $region59: #{hierarchical_pose_encoder.1} parent=1 // pred_check_branch
      %2516 = sbr.rel (0) target = $region61
    $region60: #{hierarchical_pose_encoder.1} parent=1 // pred_region
      %2517 = dma.done [#allocation5], 256
    $region61: #{hierarchical_pose_encoder.1} parent=1 // pred_fallthru
      _
    %2518 = vsyncpa [#allocation4], 1
    %2519 = vsyncpa [#allocation7], 1
    %2520 = vsyncpa [#allocation5], 1

</llo_original>
